<compile_context>
chip_gen: v5e
topology: v5e:2x2
jax: 0.10.0
libtpu: 0.0.40
codegen_flags: <defaults>
</compile_context>

<pallas_src>
import math

import jax
import jax.numpy as jnp
from jax import lax
from jax.experimental import pallas as pl
from jax.experimental.pallas import tpu as pltpu


def _round_up(x, m):
    return ((x + m - 1) // m) * m


def _nbytes(shape, dtype):
    return math.prod(shape) * jnp.dtype(dtype).itemsize


def _vmem_limit(byte_counts):
    # double-buffered blocks + in-kernel temporaries headroom, clamped so it is
    # safe on v7x (64 MiB physical) while still above the 16/32 MiB defaults.
    est = 3 * sum(byte_counts)
    return int(min(max(est, 16 * 2 ** 20), 56 * 2 ** 20))


# ---------------------------------------------------------------------------
# Pass 1: 3x3 conv (single im2col MXU matmul) + BN batch-stat accumulation.
#   grid=(B,), axis "arbitrary": the (2, C1p) stats block is revisited every
#   step (sum / sum-of-squares accumulator across the whole batch).
# ---------------------------------------------------------------------------
def conv3x3_stats_kernel(xp_ref, w1_ref, conv_ref, stats_ref):
    # xp_ref   : (1, H+2, W+2, Cin)  bf16  zero-padded NHWC image
    # w1_ref   : (9*Cin, C1p)        bf16  im2col-reshaped 3x3 weights
    # conv_ref : (1, H*W, C1p)       f32   conv output for this image
    # stats_ref: (2, C1p)            f32   [sum ; sum_of_squares] over B*H*W
    _, Hp2, Wp2, Cin = xp_ref.shape
    H, W = Hp2 - 2, Wp2 - 2

    @pl.when(pl.program_id(0) == 0)
    def _():
        stats_ref[...] = jnp.zeros_like(stats_ref)

    x = xp_ref[0]                                          # (H+2, W+2, Cin)
    # im2col: concatenate the 9 taps along K -> one MXU matmul with K = 9*Cin.
    cols = []
    for dy in range(3):
        for dx in range(3):
            cols.append(x[dy:dy + H, dx:dx + W, :].reshape(H * W, Cin))
    patches = jnp.concatenate(cols, axis=-1)               # (H*W, 9*Cin) bf16

    acc = jnp.dot(patches, w1_ref[...],
                  preferred_element_type=jnp.float32)      # (H*W, C1p) f32
    conv_ref[0] = acc

    # One-pass statistics: sum and sum-of-squares (var = E[x^2] - mu^2 later).
    ssum = jnp.sum(acc, axis=0, keepdims=True)             # (1, C1p)
    ssq = jnp.sum(acc * acc, axis=0, keepdims=True)        # (1, C1p)
    stats_ref[...] += jnp.concatenate([ssum, ssq], axis=0)


# ---------------------------------------------------------------------------
# Pass 2: fused BN affine (y = acc*s + t) + LeakyReLU(0.1) + 1x1 conv + bias.
#   grid=(B,), "parallel" (independent per image -> both TCs on v7x).
# ---------------------------------------------------------------------------
def bn_leaky_conv1x1_kernel(conv_ref, s_ref, t_ref, w2_ref, b2_ref, o_ref):
    # conv_ref: (1, H*W, C1p) f32;  s_ref/t_ref: (1, C1p) f32
    # w2_ref  : (C1p, C2p) bf16;    b2_ref: (1, C2p) f32
    # o_ref   : (1, H*W, C2p) f32   (lane-dense: C2p is a multiple of 128)
    y = conv_ref[0] * s_ref[...] + t_ref[...]              # fused BN affine, f32
    y = jnp.where(y > 0, y, 0.1 * y)                       # LeakyReLU(0.1), f32
    z = jnp.dot(y.astype(w2_ref.dtype), w2_ref[...],
                preferred_element_type=jnp.float32) + b2_ref[...]
    o_ref[0] = z


def scale_forward(x_nchw, params, num_classes):
    """Forward pass of Scale. x_nchw: (B, Cin, H, W) float32."""
    w1, gamma, beta, w2, b2 = params
    B, Cin, H, W = x_nchw.shape
    C1 = w1.shape[-1]
    C2 = w2.shape[-1]
    assert C2 == 3 * (num_classes + 5)
    HW = H * W
    C1p = _round_up(C1, 128)
    C2p = _round_up(C2, 128)
    eps = 1e-5

    # ---- layout / dtype prep (once per call, in XLA) ----
    # NCHW -> NHWC (channels on the lane axis), halo pad for the 3x3/padding=1
    # conv, cast to bf16 so the MXU operands are bf16 (f32 accumulation kept).
    # TODO(synk): accept NHWC input upstream to avoid this transpose+pad copy.
    x_nhwc = jnp.transpose(x_nchw, (0, 2, 3, 1)).astype(jnp.bfloat16)
    x_pad = jnp.pad(x_nhwc, ((0, 0), (1, 1), (1, 1), (0, 0)))

    # w1: (3,3,Cin,C1) -> (9*Cin, C1p); row order matches the kernel's
    # (dy, dx, cin) im2col concatenation order.
    w1_p = jnp.pad(w1.reshape(9 * Cin, C1),
                   ((0, 0), (0, C1p - C1))).astype(jnp.bfloat16)
    gamma_p = jnp.pad(gamma.reshape(-1), (0, C1p - C1), constant_values=1.0)
    beta_p = jnp.pad(beta.reshape(-1), (0, C1p - C1))
    w2_p = jnp.pad(w2, ((0, C1p - C1), (0, C2p - C2))).astype(jnp.bfloat16)
    b2_p = jnp.pad(b2.reshape(1, -1),
                   ((0, 0), (0, C2p - C2))).astype(jnp.float32)

    # ---- pass 1: 3x3 conv + batch statistics ----
    vmem1 = _vmem_limit([
        _nbytes((1, H + 2, W + 2, Cin), jnp.bfloat16),
        _nbytes((9 * Cin, C1p), jnp.bfloat16),
        _nbytes((HW, 9 * Cin), jnp.bfloat16),        # im2col temporary
        _nbytes((1, HW, C1p), jnp.float32),
        _nbytes((2, C1p), jnp.float32),
    ])
    conv_out, stats = pl.pallas_call(
        conv3x3_stats_kernel,
        out_shape=(jax.ShapeDtypeStruct((B, HW, C1p), jnp.float32),
                   jax.ShapeDtypeStruct((2, C1p), jnp.float32)),
        grid_spec=pltpu.PrefetchScalarGridSpec(
            num_scalar_prefetch=0,
            grid=(B,),
            in_specs=[
                pl.BlockSpec((1, H + 2, W + 2, Cin), lambda b: (b, 0, 0, 0)),
                pl.BlockSpec((9 * Cin, C1p), lambda b: (0, 0)),   # resident
            ],
            out_specs=(
                pl.BlockSpec((1, HW, C1p), lambda b: (b, 0, 0)),
                pl.BlockSpec((2, C1p), lambda b: (0, 0)),         # accumulator
            ),
        ),
        compiler_params=pltpu.CompilerParams(
            dimension_semantics=("arbitrary",),
            vmem_limit_bytes=vmem1),
    )(x_pad, w1_p)

    # ---- BN stats -> fused per-channel scale/shift (tiny, stays in XLA) ----
    n = float(B * HW)
    mu = stats[0] / n
    var = jnp.maximum(stats[1] / n - mu * mu, 0.0)   # biased variance, one pass
    s = (gamma_p * lax.rsqrt(var + eps)).reshape(1, C1p).astype(jnp.float32)
    t = (beta_p - mu * gamma_p * lax.rsqrt(var + eps)).reshape(1, C1p).astype(jnp.float32)

    # ---- pass 2: normalize + LeakyReLU + 1x1 conv ----
    vmem2 = _vmem_limit([
        _nbytes((1, HW, C1p), jnp.float32),
        _nbytes((C1p, C2p), jnp.bfloat16),
        _nbytes((1, HW, C2p), jnp.float32),
        2 * _nbytes((1, C1p), jnp.float32),
        _nbytes((1, C2p), jnp.float32),
    ])
    out_flat = pl.pallas_call(
        bn_leaky_conv1x1_kernel,
        out_shape=jax.ShapeDtypeStruct((B, HW, C2p), jnp.float32),
        grid_spec=pltpu.PrefetchScalarGridSpec(
            num_scalar_prefetch=0,
            grid=(B,),
            in_specs=[
                pl.BlockSpec((1, HW, C1p), lambda b: (b, 0, 0)),
                pl.BlockSpec((1, C1p), lambda b: (0, 0)),
                pl.BlockSpec((1, C1p), lambda b: (0, 0)),
                pl.BlockSpec((C1p, C2p), lambda b: (0, 0)),       # resident
                pl.BlockSpec((1, C2p), lambda b: (0, 0)),
            ],
            out_specs=pl.BlockSpec((1, HW, C2p), lambda b: (b, 0, 0)),
        ),
        compiler_params=pltpu.CompilerParams(
            dimension_semantics=("parallel",),
            vmem_limit_bytes=vmem2),
    )(conv_out, s, t, w2_p, b2_p)

    # ---- drop channel padding, match PyTorch output convention ----
    # NHWC channel c = a*(nc+5)+k  <=>  reshape(B,3,nc+5,H,W).permute(0,1,3,4,2)
    out = out_flat[:, :, :C2].reshape(B, H, W, 3, num_classes + 5)
    return jnp.transpose(out, (0, 3, 1, 2, 4))               # (B, 3, H, W, nc+5)


def init_params(key, in_channels, num_classes):
    c1 = 2 * in_channels
    c2 = 3 * (num_classes + 5)
    k1, k2, k3, k4, k5 = jax.random.split(key, 5)
    w1 = 0.1 * jax.random.normal(k1, (3, 3, in_channels, c1), jnp.float32)
    gamma = 1.0 + 0.1 * jax.random.normal(k2, (1, c1), jnp.float32)
    beta = 0.1 * jax.random.normal(k3, (1, c1), jnp.float32)
    w2 = 0.1 * jax.random.normal(k4, (c1, c2), jnp.float32)
    b2 = 0.1 * jax.random.normal(k5, (1, c2), jnp.float32)
    return (w1, gamma, beta, w2, b2)


if __name__ == "__main__":
    B, Cin, H, W = 2, 4, 16, 16
    num_classes = 3

    key = jax.random.PRNGKey(0)
    kx, kp = jax.random.split(key)
    x = jax.random.normal(kx, (B, Cin, H, W), jnp.float32)
    params = init_params(kp, Cin, num_classes)

    fwd = jax.jit(scale_forward, static_argnums=2)
    out = fwd(x, params, num_classes)
    out = jax.block_until_ready(out)
    assert out.shape == (B, 3, H, W, num_classes + 5), out.shape
    print("KERNEL_OK")
</pallas_src>

<mosaic_0001>
module attributes {stable_mosaic.version = 11 : i64} {
  func.func @conv3x3_stats_kernel(%arg0: i32, %arg1: memref<1x18x18x4xbf16, #tpu.memory_space<vmem>>, %arg2: memref<36x128xbf16, #tpu.memory_space<vmem>>, %arg3: memref<1x256x128xf32, #tpu.memory_space<vmem>>, %arg4: memref<2x128xf32, #tpu.memory_space<vmem>>) attributes {dimension_semantics = [#tpu.dimension_semantics<arbitrary>], iteration_bounds = array<i64: 2>, scalar_prefetch = 0 : i64, scratch_operands = 0 : i64, tpu.core_type = #tpu.core_type<tc>, window_params = [{transform_indices = @transform_0, window_bounds = array<i64: 1, 18, 18, 4>}, {pipeline_mode = #tpu.pipeline_mode<synchronous>, transform_indices = @transform_1, window_bounds = array<i64: 36, 128>}, {transform_indices = @transform_2, window_bounds = array<i64: 1, 256, 128>}, {pipeline_mode = #tpu.pipeline_mode<synchronous>, transform_indices = @transform_3, window_bounds = array<i64: 2, 128>}]} {
    %c0_i32 = arith.constant 0 : i32
    %0 = arith.cmpi eq, %arg0, %c0_i32 : i32
    %1 = arith.extui %0 : i1 to i32
    %c0_i32_0 = arith.constant 0 : i32
    %2 = arith.cmpi ne, %1, %c0_i32_0 : i32
    scf.if %2 {
      %cst_15 = arith.constant 0.000000e+00 : f32
      %38 = vector.broadcast %cst_15 : f32 to vector<2x128xf32>
      %c0_16 = arith.constant 0 : index
      %c0_17 = arith.constant 0 : index
      %39 = vector.load %arg4[%c0_16, %c0_17] : memref<2x128xf32, #tpu.memory_space<vmem>>, vector<2x128xf32>
      tpu.vector_store %arg4[%c0_16, %c0_17], %38 {strides = array<i32>} : memref<2x128xf32, #tpu.memory_space<vmem>>, vector<2x128xf32>,
    } else {
    }
    %c0 = arith.constant 0 : index
    %c0_1 = arith.constant 0 : index
    %c0_2 = arith.constant 0 : index
    %c0_3 = arith.constant 0 : index
    %3 = vector.load %arg1[%c0, %c0_1, %c0_2, %c0_3] : memref<1x18x18x4xbf16, #tpu.memory_space<vmem>>, vector<1x18x18x4xbf16>
    %4 = vector.shape_cast %3 : vector<1x18x18x4xbf16> to vector<18x18x4xbf16>
    %5 = vector.extract_strided_slice %4 {offsets = [0, 0, 0], sizes = [16, 16, 4], strides = [1, 1, 1]} : vector<18x18x4xbf16> to vector<16x16x4xbf16>
    %6 = vector.shape_cast %5 : vector<16x16x4xbf16> to vector<256x4xbf16>
    %7 = vector.extract_strided_slice %4 {offsets = [0, 1, 0], sizes = [16, 16, 4], strides = [1, 1, 1]} : vector<18x18x4xbf16> to vector<16x16x4xbf16>
    %8 = vector.shape_cast %7 : vector<16x16x4xbf16> to vector<256x4xbf16>
    %9 = vector.extract_strided_slice %4 {offsets = [0, 2, 0], sizes = [16, 16, 4], strides = [1, 1, 1]} : vector<18x18x4xbf16> to vector<16x16x4xbf16>
    %10 = vector.shape_cast %9 : vector<16x16x4xbf16> to vector<256x4xbf16>
    %11 = vector.extract_strided_slice %4 {offsets = [1, 0, 0], sizes = [16, 16, 4], strides = [1, 1, 1]} : vector<18x18x4xbf16> to vector<16x16x4xbf16>
    %12 = vector.shape_cast %11 : vector<16x16x4xbf16> to vector<256x4xbf16>
    %13 = vector.extract_strided_slice %4 {offsets = [1, 1, 0], sizes = [16, 16, 4], strides = [1, 1, 1]} : vector<18x18x4xbf16> to vector<16x16x4xbf16>
    %14 = vector.shape_cast %13 : vector<16x16x4xbf16> to vector<256x4xbf16>
    %15 = vector.extract_strided_slice %4 {offsets = [1, 2, 0], sizes = [16, 16, 4], strides = [1, 1, 1]} : vector<18x18x4xbf16> to vector<16x16x4xbf16>
    %16 = vector.shape_cast %15 : vector<16x16x4xbf16> to vector<256x4xbf16>
    %17 = vector.extract_strided_slice %4 {offsets = [2, 0, 0], sizes = [16, 16, 4], strides = [1, 1, 1]} : vector<18x18x4xbf16> to vector<16x16x4xbf16>
    %18 = vector.shape_cast %17 : vector<16x16x4xbf16> to vector<256x4xbf16>
    %19 = vector.extract_strided_slice %4 {offsets = [2, 1, 0], sizes = [16, 16, 4], strides = [1, 1, 1]} : vector<18x18x4xbf16> to vector<16x16x4xbf16>
    %20 = vector.shape_cast %19 : vector<16x16x4xbf16> to vector<256x4xbf16>
    %21 = vector.extract_strided_slice %4 {offsets = [2, 2, 0], sizes = [16, 16, 4], strides = [1, 1, 1]} : vector<18x18x4xbf16> to vector<16x16x4xbf16>
    %22 = vector.shape_cast %21 : vector<16x16x4xbf16> to vector<256x4xbf16>
    %23 = tpu.concatenate %6, %8, %10, %12, %14, %16, %18, %20, %22 in 1 : vector<256x4xbf16>, vector<256x4xbf16>, vector<256x4xbf16>, vector<256x4xbf16>, vector<256x4xbf16>, vector<256x4xbf16>, vector<256x4xbf16>, vector<256x4xbf16>, vector<256x4xbf16> -> vector<256x36xbf16>
    %c0_4 = arith.constant 0 : index
    %c0_5 = arith.constant 0 : index
    %24 = vector.load %arg2[%c0_4, %c0_5] : memref<36x128xbf16, #tpu.memory_space<vmem>>, vector<36x128xbf16>
    %cst = arith.constant dense<0.000000e+00> : vector<256x128xf32>
    %25 = tpu.matmul %23, %24, %cst {dimension_numbers = #tpu.dot_dimension_numbers<[1], [0], [0], [1], [0, 0, 1, 1], [], []>} : vector<256x36xbf16>, vector<36x128xbf16>, vector<256x128xf32> -> vector<256x128xf32>
    %c0_6 = arith.constant 0 : index
    %c0_7 = arith.constant 0 : index
    %c0_8 = arith.constant 0 : index
    %26 = vector.load %arg3[%c0_6, %c0_7, %c0_8] : memref<1x256x128xf32, #tpu.memory_space<vmem>>, vector<1x256x128xf32>
    %27 = vector.shape_cast %26 : vector<1x256x128xf32> to vector<256x128xf32>
    %28 = vector.shape_cast %25 : vector<256x128xf32> to vector<1x256x128xf32>
    tpu.vector_store %arg3[%c0_6, %c0_7, %c0_8], %28 {strides = array<i32>} : memref<1x256x128xf32, #tpu.memory_space<vmem>>, vector<1x256x128xf32>,
    %cst_9 = arith.constant dense<0.000000e+00> : vector<128xf32>
    %29 = vector.multi_reduction <add>, %25, %cst_9 [0] : vector<256x128xf32> to vector<128xf32>
    %30 = vector.shape_cast %29 : vector<128xf32> to vector<1x128xf32>
    %31 = arith.mulf %25, %25 : vector<256x128xf32>
    %cst_10 = arith.constant dense<0.000000e+00> : vector<128xf32>
    %32 = vector.multi_reduction <add>, %31, %cst_10 [0] : vector<256x128xf32> to vector<128xf32>
    %33 = vector.shape_cast %32 : vector<128xf32> to vector<1x128xf32>
    %c0_11 = arith.constant 0 : index
    %c0_12 = arith.constant 0 : index
    %34 = vector.load %arg4[%c0_11, %c0_12] : memref<2x128xf32, #tpu.memory_space<vmem>>, vector<2x128xf32>
    %35 = tpu.concatenate %30, %33 in 0 : vector<1x128xf32>, vector<1x128xf32> -> vector<2x128xf32>
    %36 = arith.addf %34, %35 : vector<2x128xf32>
    %c0_13 = arith.constant 0 : index
    %c0_14 = arith.constant 0 : index
    %37 = vector.load %arg4[%c0_13, %c0_14] : memref<2x128xf32, #tpu.memory_space<vmem>>, vector<2x128xf32>
    tpu.vector_store %arg4[%c0_13, %c0_14], %36 {strides = array<i32>} : memref<2x128xf32, #tpu.memory_space<vmem>>, vector<2x128xf32>,
    return
  }
  func.func @transform_0(%arg0: i32) -> (i32, i32, i32, i32) {
    %c0_i32 = arith.constant 0 : i32
    %c0_i32_0 = arith.constant 0 : i32
    %c0_i32_1 = arith.constant 0 : i32
    %c0_i32_2 = arith.constant 0 : i32
    return %arg0, %c0_i32, %c0_i32_0, %c0_i32_1 : i32, i32, i32, i32
  }
  func.func @transform_1(%arg0: i32) -> (i32, i32) {
    %c0_i32 = arith.constant 0 : i32
    %c0_i32_0 = arith.constant 0 : i32
    %c0_i32_1 = arith.constant 0 : i32
    return %c0_i32, %c0_i32_0 : i32, i32
  }
  func.func @transform_2(%arg0: i32) -> (i32, i32, i32) {
    %c0_i32 = arith.constant 0 : i32
    %c0_i32_0 = arith.constant 0 : i32
    %c0_i32_1 = arith.constant 0 : i32
    return %arg0, %c0_i32, %c0_i32_0 : i32, i32, i32
  }
  func.func @transform_3(%arg0: i32) -> (i32, i32) {
    %c0_i32 = arith.constant 0 : i32
    %c0_i32_0 = arith.constant 0 : i32
    %c0_i32_1 = arith.constant 0 : i32
    return %c0_i32, %c0_i32_0 : i32, i32
  }
}

module attributes {stable_mosaic.version = 11 : i64} {
  func.func @bn_leaky_conv1x1_kernel(%arg0: i32, %arg1: memref<1x256x128xf32, #tpu.memory_space<vmem>>, %arg2: memref<1x128xf32, #tpu.memory_space<vmem>>, %arg3: memref<1x128xf32, #tpu.memory_space<vmem>>, %arg4: memref<128x128xbf16, #tpu.memory_space<vmem>>, %arg5: memref<1x128xf32, #tpu.memory_space<vmem>>, %arg6: memref<1x256x128xf32, #tpu.memory_space<vmem>>) attributes {dimension_semantics = [#tpu.dimension_semantics<parallel>], iteration_bounds = array<i64: 2>, scalar_prefetch = 0 : i64, scratch_operands = 0 : i64, tpu.core_type = #tpu.core_type<tc>, window_params = [{transform_indices = @transform_0, window_bounds = array<i64: 1, 256, 128>}, {pipeline_mode = #tpu.pipeline_mode<synchronous>, transform_indices = @transform_1, window_bounds = array<i64: 1, 128>}, {pipeline_mode = #tpu.pipeline_mode<synchronous>, transform_indices = @transform_2, window_bounds = array<i64: 1, 128>}, {pipeline_mode = #tpu.pipeline_mode<synchronous>, transform_indices = @transform_3, window_bounds = array<i64: 128, 128>}, {pipeline_mode = #tpu.pipeline_mode<synchronous>, transform_indices = @transform_4, window_bounds = array<i64: 1, 128>}, {transform_indices = @transform_5, window_bounds = array<i64: 1, 256, 128>}]} {
    %c0 = arith.constant 0 : index
    %c0_0 = arith.constant 0 : index
    %c0_1 = arith.constant 0 : index
    %0 = vector.load %arg1[%c0, %c0_0, %c0_1] : memref<1x256x128xf32, #tpu.memory_space<vmem>>, vector<1x256x128xf32>
    %1 = vector.shape_cast %0 : vector<1x256x128xf32> to vector<256x128xf32>
    %c0_2 = arith.constant 0 : index
    %c0_3 = arith.constant 0 : index
    %2 = vector.load %arg2[%c0_2, %c0_3] : memref<1x128xf32, #tpu.memory_space<vmem>>, vector<1x128xf32>
    %3 = vector.broadcast %2 : vector<1x128xf32> to vector<256x128xf32>
    %4 = arith.mulf %1, %3 : vector<256x128xf32>
    %c0_4 = arith.constant 0 : index
    %c0_5 = arith.constant 0 : index
    %5 = vector.load %arg3[%c0_4, %c0_5] : memref<1x128xf32, #tpu.memory_space<vmem>>, vector<1x128xf32>
    %6 = vector.broadcast %5 : vector<1x128xf32> to vector<256x128xf32>
    %7 = arith.addf %4, %6 : vector<256x128xf32>
    %cst = arith.constant 0.000000e+00 : f32
    %8 = vector.broadcast %cst : f32 to vector<256x128xf32>
    %9 = arith.cmpf ogt, %7, %8 : vector<256x128xf32>
    %cst_6 = arith.constant 1.000000e-01 : f32
    %10 = vector.broadcast %cst_6 : f32 to vector<256x128xf32>
    %11 = arith.mulf %10, %7 : vector<256x128xf32>
    %12 = arith.select %9, %7, %11 : vector<256x128xi1>, vector<256x128xf32>
    %13 = arith.truncf %12 : vector<256x128xf32> to vector<256x128xbf16>
    %c0_7 = arith.constant 0 : index
    %c0_8 = arith.constant 0 : index
    %14 = vector.load %arg4[%c0_7, %c0_8] : memref<128x128xbf16, #tpu.memory_space<vmem>>, vector<128x128xbf16>
    %cst_9 = arith.constant dense<0.000000e+00> : vector<256x128xf32>
    %15 = tpu.matmul %13, %14, %cst_9 {dimension_numbers = #tpu.dot_dimension_numbers<[1], [0], [0], [1], [0, 0, 1, 1], [], []>} : vector<256x128xbf16>, vector<128x128xbf16>, vector<256x128xf32> -> vector<256x128xf32>
    %c0_10 = arith.constant 0 : index
    %c0_11 = arith.constant 0 : index
    %16 = vector.load %arg5[%c0_10, %c0_11] : memref<1x128xf32, #tpu.memory_space<vmem>>, vector<1x128xf32>
    %17 = vector.broadcast %16 : vector<1x128xf32> to vector<256x128xf32>
    %18 = arith.addf %15, %17 : vector<256x128xf32>
    %c0_12 = arith.constant 0 : index
    %c0_13 = arith.constant 0 : index
    %c0_14 = arith.constant 0 : index
    %19 = vector.load %arg6[%c0_12, %c0_13, %c0_14] : memref<1x256x128xf32, #tpu.memory_space<vmem>>, vector<1x256x128xf32>
    %20 = vector.shape_cast %19 : vector<1x256x128xf32> to vector<256x128xf32>
    %21 = vector.shape_cast %18 : vector<256x128xf32> to vector<1x256x128xf32>
    tpu.vector_store %arg6[%c0_12, %c0_13, %c0_14], %21 {strides = array<i32>} : memref<1x256x128xf32, #tpu.memory_space<vmem>>, vector<1x256x128xf32>,
    return
  }
  func.func @transform_0(%arg0: i32) -> (i32, i32, i32) {
    %c0_i32 = arith.constant 0 : i32
    %c0_i32_0 = arith.constant 0 : i32
    %c0_i32_1 = arith.constant 0 : i32
    return %arg0, %c0_i32, %c0_i32_0 : i32, i32, i32
  }
  func.func @transform_1(%arg0: i32) -> (i32, i32) {
    %c0_i32 = arith.constant 0 : i32
    %c0_i32_0 = arith.constant 0 : i32
    %c0_i32_1 = arith.constant 0 : i32
    return %c0_i32, %c0_i32_0 : i32, i32
  }
  func.func @transform_2(%arg0: i32) -> (i32, i32) {
    %c0_i32 = arith.constant 0 : i32
    %c0_i32_0 = arith.constant 0 : i32
    %c0_i32_1 = arith.constant 0 : i32
    return %c0_i32, %c0_i32_0 : i32, i32
  }
  func.func @transform_3(%arg0: i32) -> (i32, i32) {
    %c0_i32 = arith.constant 0 : i32
    %c0_i32_0 = arith.constant 0 : i32
    %c0_i32_1 = arith.constant 0 : i32
    return %c0_i32, %c0_i32_0 : i32, i32
  }
  func.func @transform_4(%arg0: i32) -> (i32, i32) {
    %c0_i32 = arith.constant 0 : i32
    %c0_i32_0 = arith.constant 0 : i32
    %c0_i32_1 = arith.constant 0 : i32
    return %c0_i32, %c0_i32_0 : i32, i32
  }
  func.func @transform_5(%arg0: i32) -> (i32, i32, i32) {
    %c0_i32 = arith.constant 0 : i32
    %c0_i32_0 = arith.constant 0 : i32
    %c0_i32_1 = arith.constant 0 : i32
    return %arg0, %c0_i32, %c0_i32_0 : i32, i32, i32
  }
}

</mosaic_0001>

<llo_original>
// kernel: scale_forward.3
$region0: #{scale_forward.3}
  #allocation0 [shape = 'u32[]', space=smem, size = 0x4, offset = 0x4, fixed_abs, tag = 'smem constant byte address 0x4 - core index']
  #allocation1 [shape = 'u32[72,128]{1,0:T(1,128)}', space=vmem, size = 0x9000, scoped, tag = 'internal scratch']
  %s0 = inlined_call_operand.vmem [shape: f32[2,256,128], index: 0, kind: input, shape index: {}]
  %s1 = inlined_call_operand.vmem [shape: f32[1,128], index: 1, kind: input, shape index: {}]
  %s2 = inlined_call_operand.vmem [shape: f32[1,128], index: 2, kind: input, shape index: {}]
  %s3 = inlined_call_operand.vmem [shape: bf16[128,128], index: 3, kind: input, shape index: {}]
  %s4 = inlined_call_operand.vmem [shape: f32[1,128], index: 4, kind: input, shape index: {}]
  %s5 = inlined_call_operand.vmem [shape: f32[2,256,128], index: 5, kind: output, shape index: {}]
  %s6 = sld [smem:[#allocation0]]
  $region53: #{scale_forward.3} parent=0
    _
  %s8 = ssub.s32 1, %s6
  %s9 = scalar_select 0, %s8, %s6
  loop: start=0, step=1, limit=4
  $region2: #{scale_forward.3} parent=0 // loop_pre_header
    _
  $region3: #{scale_forward.3} parent=0 // loop_header
    %s11 = sphi 0, %s15
    %p12 = scmp.ge.s32.totalorder %s11, 4
    %s21 = sphi 0, %s23
    %s24 = sphi 0, %s21
    %s25 = sphi 0, %s24
    %s41 = sphi 0, %s25
    %s45 = sphi 0, %s45
    %s47 = sphi 0, %s45
    %s48 = sphi 0, %s47
    %s62 = sphi 0, %s48
    %s66 = sphi 0, %s66
    %s68 = sphi 0, %s66
    %s69 = sphi 0, %s68
    %s83 = sphi 0, %s69
    %s87 = sphi 0, %s87
    %s89 = sphi 0, %s87
    %s90 = sphi 0, %s89
    %s104 = sphi 0, %s90
    %s108 = sphi 0, %s108
    %s110 = sphi 0, %s108
    %s111 = sphi 0, %s110
    %s125 = sphi 0, %s111
    %s131 = sphi 0, %s133
    %s134 = sphi 0, %s131
    %s135 = sphi 0, %s134
    %s151 = sphi 0, %s135
  $region4: #{scale_forward.3} parent=0 // loop_header_branch
    %14 = sbr.rel (%p12) target = $region8
  $region5: #{scale_forward.3} parent=0 // loop_body
    %s16 = ssub.s32 %s11, 1
    %s17 = ssub.s32 %s11, 2
    %s18 = sadd.s32 %s11, 1
    %s19 = ssub.s32 %s11, %s18
    %p20 = scmp.eq.s32.totalorder %s19, 0
    %s22 = sadd.s32 %s21, 1
    %s23 = scalar_select %p20, %s21, %s22
    %p26 = pneg %p20
    %p27 = scmp.eq.s32.totalorder %s11, 1
    %p28 = por %p26, %p27
    %p29 = scmp.ne.s32.totalorder %s21, %s24
    %p30 = scmp.eq.s32.totalorder %s11, 0
    %p31 = por %p29, %p30
    %p32 = scmp.ne.s32.totalorder %s21, %s24
    %p33 = scmp.eq.s32.totalorder %s16, 1
    %p34 = por %p32, %p33
    %p35 = scmp.ne.s32.totalorder %s24, %s25
    %p36 = scmp.eq.s32.totalorder %s16, 0
    %p37 = por %p35, %p36
    %p38 = scmp.ne.s32.totalorder %s24, %s25
    %p39 = scmp.eq.s32.totalorder %s17, 1
    %p40 = por %p38, %p39
    %p42 = scmp.ne.s32.totalorder %s25, %s41
    %p43 = scmp.eq.s32.totalorder %s17, 0
    %p44 = por %p42, %p43
    %s46 = sadd.s32 %s45, 1
    %p49 = scmp.eq.s32.totalorder %s11, 1
    %p50 = scmp.ne.s32.totalorder %s45, %s47
    %p51 = scmp.eq.s32.totalorder %s11, 0
    %p52 = por %p50, %p51
    %p53 = scmp.ne.s32.totalorder %s45, %s47
    %p54 = scmp.eq.s32.totalorder %s16, 1
    %p55 = por %p53, %p54
    %p56 = scmp.ne.s32.totalorder %s47, %s48
    %p57 = scmp.eq.s32.totalorder %s16, 0
    %p58 = por %p56, %p57
    %p59 = scmp.ne.s32.totalorder %s47, %s48
    %p60 = scmp.eq.s32.totalorder %s17, 1
    %p61 = por %p59, %p60
    %p63 = scmp.ne.s32.totalorder %s48, %s62
    %p64 = scmp.eq.s32.totalorder %s17, 0
    %p65 = por %p63, %p64
    %s67 = sadd.s32 %s66, 1
    %p70 = scmp.eq.s32.totalorder %s11, 1
    %p71 = scmp.ne.s32.totalorder %s66, %s68
    %p72 = scmp.eq.s32.totalorder %s11, 0
    %p73 = por %p71, %p72
    %p74 = scmp.ne.s32.totalorder %s66, %s68
    %p75 = scmp.eq.s32.totalorder %s16, 1
    %p76 = por %p74, %p75
    %p77 = scmp.ne.s32.totalorder %s68, %s69
    %p78 = scmp.eq.s32.totalorder %s16, 0
    %p79 = por %p77, %p78
    %p80 = scmp.ne.s32.totalorder %s68, %s69
    %p81 = scmp.eq.s32.totalorder %s17, 1
    %p82 = por %p80, %p81
    %p84 = scmp.ne.s32.totalorder %s69, %s83
    %p85 = scmp.eq.s32.totalorder %s17, 0
    %p86 = por %p84, %p85
    %s88 = sadd.s32 %s87, 1
    %p91 = scmp.eq.s32.totalorder %s11, 1
    %p92 = scmp.ne.s32.totalorder %s87, %s89
    %p93 = scmp.eq.s32.totalorder %s11, 0
    %p94 = por %p92, %p93
    %p95 = scmp.ne.s32.totalorder %s87, %s89
    %p96 = scmp.eq.s32.totalorder %s16, 1
    %p97 = por %p95, %p96
    %p98 = scmp.ne.s32.totalorder %s89, %s90
    %p99 = scmp.eq.s32.totalorder %s16, 0
    %p100 = por %p98, %p99
    %p101 = scmp.ne.s32.totalorder %s89, %s90
    %p102 = scmp.eq.s32.totalorder %s17, 1
    %p103 = por %p101, %p102
    %p105 = scmp.ne.s32.totalorder %s90, %s104
    %p106 = scmp.eq.s32.totalorder %s17, 0
    %p107 = por %p105, %p106
    %s109 = sadd.s32 %s108, 1
    %p112 = scmp.eq.s32.totalorder %s11, 1
    %p113 = scmp.ne.s32.totalorder %s108, %s110
    %p114 = scmp.eq.s32.totalorder %s11, 0
    %p115 = por %p113, %p114
    %p116 = scmp.ne.s32.totalorder %s108, %s110
    %p117 = scmp.eq.s32.totalorder %s16, 1
    %p118 = por %p116, %p117
    %p119 = scmp.ne.s32.totalorder %s110, %s111
    %p120 = scmp.eq.s32.totalorder %s16, 0
    %p121 = por %p119, %p120
    %p122 = scmp.ne.s32.totalorder %s110, %s111
    %p123 = scmp.eq.s32.totalorder %s17, 1
    %p124 = por %p122, %p123
    %p126 = scmp.ne.s32.totalorder %s111, %s125
    %p127 = scmp.eq.s32.totalorder %s17, 0
    %p128 = por %p126, %p127
    %s129 = ssub.s32 %s11, %s18
    %p130 = scmp.eq.s32.totalorder %s129, 0
    %s132 = sadd.s32 %s131, 1
    %s133 = scalar_select %p130, %s131, %s132
    %p136 = pneg %p130
    %p137 = scmp.eq.s32.totalorder %s11, 1
    %p138 = por %p136, %p137
    %p139 = scmp.ne.s32.totalorder %s131, %s134
    %p140 = scmp.eq.s32.totalorder %s11, 0
    %p141 = por %p139, %p140
    %p142 = scmp.ne.s32.totalorder %s131, %s134
    %p143 = scmp.eq.s32.totalorder %s16, 1
    %p144 = por %p142, %p143
    %p145 = scmp.ne.s32.totalorder %s134, %s135
    %p146 = scmp.eq.s32.totalorder %s16, 0
    %p147 = por %p145, %p146
    %p148 = scmp.ne.s32.totalorder %s134, %s135
    %p149 = scmp.eq.s32.totalorder %s17, 1
    %p150 = por %p148, %p149
    %p152 = scmp.ne.s32.totalorder %s135, %s151
    %p153 = scmp.eq.s32.totalorder %s17, 0
    %p154 = por %p152, %p153
    %p155 = scmp.le.s32.totalorder 1, %s11
    %p156 = scmp.lt.s32.totalorder %s11, 3
    %p157 = pnand %p155, %p156
    %p158 = pneg %p157
    // Predicated region
    $region9: #{scale_forward.3} parent=5 // pred_check
      _
    $region10: #{scale_forward.3} parent=5 // pred_check_branch
      %160 = sbr.rel (%p157) target = $region12
    $region11: #{scale_forward.3} parent=5 // pred_region
      %s161 = ssub.s32 %s11, 1
      // Predicated region
      $region13: #{scale_forward.3} parent=11 // pred_check
        %p162 = pneg %p58
      $region14: #{scale_forward.3} parent=11 // pred_check_branch
        %164 = sbr.rel (%p162) target = $region16
      $region15: #{scale_forward.3} parent=11 // pred_region
        _
      $region16: #{scale_forward.3} parent=11 // pred_fallthru
        _
      // Predicated region
      $region17: #{scale_forward.3} parent=11 // pred_check
        %p165 = pneg %p79
      $region18: #{scale_forward.3} parent=11 // pred_check_branch
        %167 = sbr.rel (%p165) target = $region20
      $region19: #{scale_forward.3} parent=11 // pred_region
        _
      $region20: #{scale_forward.3} parent=11 // pred_fallthru
        _
      // Predicated region
      $region21: #{scale_forward.3} parent=11 // pred_check
        %p168 = pneg %p100
      $region22: #{scale_forward.3} parent=11 // pred_check_branch
        %170 = sbr.rel (%p168) target = $region24
      $region23: #{scale_forward.3} parent=11 // pred_region
        _
      $region24: #{scale_forward.3} parent=11 // pred_fallthru
        _
      // Predicated region
      $region25: #{scale_forward.3} parent=11 // pred_check
        %p171 = pneg %p121
      $region26: #{scale_forward.3} parent=11 // pred_check_branch
        %173 = sbr.rel (%p171) target = $region28
      $region27: #{scale_forward.3} parent=11 // pred_region
        _
      $region28: #{scale_forward.3} parent=11 // pred_fallthru
        _
    $region12: #{scale_forward.3} parent=5 // pred_fallthru
      _
    %p174 = scmp.lt.s32.totalorder %s11, 2
    // Predicated region
    $region29: #{scale_forward.3} parent=5 // pred_check
      %p175 = pneg %p174
    $region30: #{scale_forward.3} parent=5 // pred_check_branch
      %177 = sbr.rel (%p175) target = $region32
    $region31: #{scale_forward.3} parent=5 // pred_region
      // Predicated region
      $region33: #{scale_forward.3} parent=31 // pred_check
        %p178 = pneg %p31
      $region34: #{scale_forward.3} parent=31 // pred_check_branch
        %180 = sbr.rel (%p178) target = $region36
      $region35: #{scale_forward.3} parent=31 // pred_region
        %p181 = scmp.lt.s32.totalorder %s11, 1
        %s182 = scalar_select %p181, %s11, 1
        %s183 = smul.addr %s182, 32
        %s184 = smul.addr %s183, 8
        %s185 = scalar_lea.vmem %s0, %s184
      $region36: #{scale_forward.3} parent=31 // pred_fallthru
        _
    $region32: #{scale_forward.3} parent=5 // pred_fallthru
      _
    %p186 = scmp.le.s32.totalorder 1, %s11
    %p187 = scmp.lt.s32.totalorder %s11, 3
    %p188 = pnand %p186, %p187
    %p189 = pneg %p188
    // Predicated region
    $region37: #{scale_forward.3} parent=5 // pred_check
      _
    $region38: #{scale_forward.3} parent=5 // pred_check_branch
      %191 = sbr.rel (%p188) target = $region40
    $region39: #{scale_forward.3} parent=5 // pred_region
      %s192 = ssub.s32 %s11, 1
      %p193 = scmp.lt.s32.totalorder %s16, 1
      %s194 = scalar_select %p193, %s16, 1
      %s195 = smul.addr %s194, 32
      %s196 = smul.addr %s195, 8
      %s197 = scalar_lea.vmem %s0, %s196
      %p198 = pneg %p37
      %p199 = pneg %p34
      %p200 = pneg %p58
      %p201 = pneg %p55
      %p202 = pneg %p79
      %p203 = pneg %p76
      %p204 = pneg %p100
      %p205 = pneg %p97
      %p206 = pneg %p121
      %p207 = pneg %p118
      %p208 = pneg %p147
      %p209 = pneg %p144
      %p210 = scmp.lt.s32.totalorder %s16, 1
      %s211 = scalar_select %p210, %s16, 1
      %s212 = smul.addr %s211, 32
      %s213 = smul.addr %s212, 8
      %s214 = scalar_lea.vmem %s5, %s213
      %p215 = scmp.lt.s32.totalorder %s16, 1
      %s216 = scalar_select %p215, %s16, 1
      %s217 = smul.addr %s216, 32
      %s218 = smul.addr %s217, 8
      %s219 = scalar_lea.vmem %s0, %s218
      %p220 = scmp.lt.s32.totalorder %s16, 1
      %s221 = scalar_select %p220, %s16, 1
      %s222 = smul.addr %s221, 32
      %s223 = smul.addr %s222, 8
      %s224 = scalar_lea.vmem %s5, %s223
      %v225 = vld [vmem:[%s219] sm:$0xff]
      %v226 = vld [vmem:[%s219 + $0x8] sm:$0xff]
      %v227 = vld [vmem:[%s219 + $0x10] sm:$0xff]
      %v228 = vld [vmem:[%s219 + $0x18] sm:$0xff]
      %v229 = vld [vmem:[%s219 + $0x20] sm:$0xff]
      %v230 = vld [vmem:[%s219 + $0x28] sm:$0xff]
      %v231 = vld [vmem:[%s219 + $0x30] sm:$0xff]
      %v232 = vld [vmem:[%s219 + $0x38] sm:$0xff]
      %v233 = vld [vmem:[%s219 + $0x40] sm:$0xff]
      %v234 = vld [vmem:[%s219 + $0x48] sm:$0xff]
      %v235 = vld [vmem:[%s219 + $0x50] sm:$0xff]
      %v236 = vld [vmem:[%s219 + $0x58] sm:$0xff]
      %v237 = vld [vmem:[%s219 + $0x60] sm:$0xff]
      %v238 = vld [vmem:[%s219 + $0x68] sm:$0xff]
      %v239 = vld [vmem:[%s219 + $0x70] sm:$0xff]
      %v240 = vld [vmem:[%s219 + $0x78] sm:$0xff]
      %v241 = vld [vmem:[%s219 + $0x80] sm:$0xff]
      %v242 = vld [vmem:[%s219 + $0x88] sm:$0xff]
      %v243 = vld [vmem:[%s219 + $0x90] sm:$0xff]
      %v244 = vld [vmem:[%s219 + $0x98] sm:$0xff]
      %v245 = vld [vmem:[%s219 + $0xa0] sm:$0xff]
      %v246 = vld [vmem:[%s219 + $0xa8] sm:$0xff]
      %v247 = vld [vmem:[%s219 + $0xb0] sm:$0xff]
      %v248 = vld [vmem:[%s219 + $0xb8] sm:$0xff]
      %v249 = vld [vmem:[%s219 + $0xc0] sm:$0xff]
      %v250 = vld [vmem:[%s219 + $0xc8] sm:$0xff]
      %v251 = vld [vmem:[%s219 + $0xd0] sm:$0xff]
      %v252 = vld [vmem:[%s219 + $0xd8] sm:$0xff]
      %v253 = vld [vmem:[%s219 + $0xe0] sm:$0xff]
      %v254 = vld [vmem:[%s219 + $0xe8] sm:$0xff]
      %v255 = vld [vmem:[%s219 + $0xf0] sm:$0xff]
      %v256 = vld [vmem:[%s219 + $0xf8] sm:$0xff]
      %v257 = vld [vmem:[%s1] sm:$0x1]
      %v259 = vperm.slane %v257, 0
      %v261 = vmul.f32 %v225, %v259
      %v262 = vmul.f32 %v226, %v259
      %v263 = vmul.f32 %v227, %v259
      %v264 = vmul.f32 %v228, %v259
      %v265 = vmul.f32 %v229, %v259
      %v266 = vmul.f32 %v230, %v259
      %v267 = vmul.f32 %v231, %v259
      %v268 = vmul.f32 %v232, %v259
      %v269 = vmul.f32 %v233, %v259
      %v270 = vmul.f32 %v234, %v259
      %v271 = vmul.f32 %v235, %v259
      %v272 = vmul.f32 %v236, %v259
      %v273 = vmul.f32 %v237, %v259
      %v274 = vmul.f32 %v238, %v259
      %v275 = vmul.f32 %v239, %v259
      %v276 = vmul.f32 %v240, %v259
      %v277 = vmul.f32 %v241, %v259
      %v278 = vmul.f32 %v242, %v259
      %v279 = vmul.f32 %v243, %v259
      %v280 = vmul.f32 %v244, %v259
      %v281 = vmul.f32 %v245, %v259
      %v282 = vmul.f32 %v246, %v259
      %v283 = vmul.f32 %v247, %v259
      %v284 = vmul.f32 %v248, %v259
      %v285 = vmul.f32 %v249, %v259
      %v286 = vmul.f32 %v250, %v259
      %v287 = vmul.f32 %v251, %v259
      %v288 = vmul.f32 %v252, %v259
      %v289 = vmul.f32 %v253, %v259
      %v290 = vmul.f32 %v254, %v259
      %v291 = vmul.f32 %v255, %v259
      %v292 = vmul.f32 %v256, %v259
      %v293 = vld [vmem:[%s2] sm:$0x1]
      %v295 = vperm.slane %v293, 0
      %v297 = vadd.f32 %v261, %v295
      %v298 = vadd.f32 %v262, %v295
      %v299 = vadd.f32 %v263, %v295
      %v300 = vadd.f32 %v264, %v295
      %v301 = vadd.f32 %v265, %v295
      %v302 = vadd.f32 %v266, %v295
      %v303 = vadd.f32 %v267, %v295
      %v304 = vadd.f32 %v268, %v295
      %v305 = vadd.f32 %v269, %v295
      %v306 = vadd.f32 %v270, %v295
      %v307 = vadd.f32 %v271, %v295
      %v308 = vadd.f32 %v272, %v295
      %v309 = vadd.f32 %v273, %v295
      %v310 = vadd.f32 %v274, %v295
      %v311 = vadd.f32 %v275, %v295
      %v312 = vadd.f32 %v276, %v295
      %v313 = vadd.f32 %v277, %v295
      %v314 = vadd.f32 %v278, %v295
      %v315 = vadd.f32 %v279, %v295
      %v316 = vadd.f32 %v280, %v295
      %v317 = vadd.f32 %v281, %v295
      %v318 = vadd.f32 %v282, %v295
      %v319 = vadd.f32 %v283, %v295
      %v320 = vadd.f32 %v284, %v295
      %v321 = vadd.f32 %v285, %v295
      %v322 = vadd.f32 %v286, %v295
      %v323 = vadd.f32 %v287, %v295
      %v324 = vadd.f32 %v288, %v295
      %v325 = vadd.f32 %v289, %v295
      %v326 = vadd.f32 %v290, %v295
      %v327 = vadd.f32 %v291, %v295
      %v328 = vadd.f32 %v292, %v295
      %vm329 = vcmp.gt.f32.partialorder %v297, 0.0
      %vm330 = vcmp.gt.f32.partialorder %v298, 0.0
      %vm331 = vcmp.gt.f32.partialorder %v299, 0.0
      %vm332 = vcmp.gt.f32.partialorder %v300, 0.0
      %vm333 = vcmp.gt.f32.partialorder %v301, 0.0
      %vm334 = vcmp.gt.f32.partialorder %v302, 0.0
      %vm335 = vcmp.gt.f32.partialorder %v303, 0.0
      %vm336 = vcmp.gt.f32.partialorder %v304, 0.0
      %vm337 = vcmp.gt.f32.partialorder %v305, 0.0
      %vm338 = vcmp.gt.f32.partialorder %v306, 0.0
      %vm339 = vcmp.gt.f32.partialorder %v307, 0.0
      %vm340 = vcmp.gt.f32.partialorder %v308, 0.0
      %vm341 = vcmp.gt.f32.partialorder %v309, 0.0
      %vm342 = vcmp.gt.f32.partialorder %v310, 0.0
      %vm343 = vcmp.gt.f32.partialorder %v311, 0.0
      %vm344 = vcmp.gt.f32.partialorder %v312, 0.0
      %vm345 = vcmp.gt.f32.partialorder %v313, 0.0
      %vm346 = vcmp.gt.f32.partialorder %v314, 0.0
      %vm347 = vcmp.gt.f32.partialorder %v315, 0.0
      %vm348 = vcmp.gt.f32.partialorder %v316, 0.0
      %vm349 = vcmp.gt.f32.partialorder %v317, 0.0
      %vm350 = vcmp.gt.f32.partialorder %v318, 0.0
      %vm351 = vcmp.gt.f32.partialorder %v319, 0.0
      %vm352 = vcmp.gt.f32.partialorder %v320, 0.0
      %vm353 = vcmp.gt.f32.partialorder %v321, 0.0
      %vm354 = vcmp.gt.f32.partialorder %v322, 0.0
      %vm355 = vcmp.gt.f32.partialorder %v323, 0.0
      %vm356 = vcmp.gt.f32.partialorder %v324, 0.0
      %vm357 = vcmp.gt.f32.partialorder %v325, 0.0
      %vm358 = vcmp.gt.f32.partialorder %v326, 0.0
      %vm359 = vcmp.gt.f32.partialorder %v327, 0.0
      %vm360 = vcmp.gt.f32.partialorder %v328, 0.0
      %v361 = vmul.f32 %v297, 0.1
      %v362 = vmul.f32 %v298, 0.1
      %v363 = vmul.f32 %v299, 0.1
      %v364 = vmul.f32 %v300, 0.1
      %v365 = vmul.f32 %v301, 0.1
      %v366 = vmul.f32 %v302, 0.1
      %v367 = vmul.f32 %v303, 0.1
      %v368 = vmul.f32 %v304, 0.1
      %v369 = vmul.f32 %v305, 0.1
      %v370 = vmul.f32 %v306, 0.1
      %v371 = vmul.f32 %v307, 0.1
      %v372 = vmul.f32 %v308, 0.1
      %v373 = vmul.f32 %v309, 0.1
      %v374 = vmul.f32 %v310, 0.1
      %v375 = vmul.f32 %v311, 0.1
      %v376 = vmul.f32 %v312, 0.1
      %v377 = vmul.f32 %v313, 0.1
      %v378 = vmul.f32 %v314, 0.1
      %v379 = vmul.f32 %v315, 0.1
      %v380 = vmul.f32 %v316, 0.1
      %v381 = vmul.f32 %v317, 0.1
      %v382 = vmul.f32 %v318, 0.1
      %v383 = vmul.f32 %v319, 0.1
      %v384 = vmul.f32 %v320, 0.1
      %v385 = vmul.f32 %v321, 0.1
      %v386 = vmul.f32 %v322, 0.1
      %v387 = vmul.f32 %v323, 0.1
      %v388 = vmul.f32 %v324, 0.1
      %v389 = vmul.f32 %v325, 0.1
      %v390 = vmul.f32 %v326, 0.1
      %v391 = vmul.f32 %v327, 0.1
      %v392 = vmul.f32 %v328, 0.1
      %v393 = vsel %vm329, %v297, %v361
      %v394 = vsel %vm330, %v298, %v362
      %v395 = vsel %vm331, %v299, %v363
      %v396 = vsel %vm332, %v300, %v364
      %v397 = vsel %vm333, %v301, %v365
      %v398 = vsel %vm334, %v302, %v366
      %v399 = vsel %vm335, %v303, %v367
      %v400 = vsel %vm336, %v304, %v368
      %v401 = vsel %vm337, %v305, %v369
      %v402 = vsel %vm338, %v306, %v370
      %v403 = vsel %vm339, %v307, %v371
      %v404 = vsel %vm340, %v308, %v372
      %v405 = vsel %vm341, %v309, %v373
      %v406 = vsel %vm342, %v310, %v374
      %v407 = vsel %vm343, %v311, %v375
      %v408 = vsel %vm344, %v312, %v376
      %v409 = vsel %vm345, %v313, %v377
      %v410 = vsel %vm346, %v314, %v378
      %v411 = vsel %vm347, %v315, %v379
      %v412 = vsel %vm348, %v316, %v380
      %v413 = vsel %vm349, %v317, %v381
      %v414 = vsel %vm350, %v318, %v382
      %v415 = vsel %vm351, %v319, %v383
      %v416 = vsel %vm352, %v320, %v384
      %v417 = vsel %vm353, %v321, %v385
      %v418 = vsel %vm354, %v322, %v386
      %v419 = vsel %vm355, %v323, %v387
      %v420 = vsel %vm356, %v324, %v388
      %v421 = vsel %vm357, %v325, %v389
      %v422 = vsel %vm358, %v326, %v390
      %v423 = vsel %vm359, %v327, %v391
      %v424 = vsel %vm360, %v328, %v392
      %v425 = vpack.c.bf16 %v394, %v393
      %v426 = vpack.c.bf16 %v396, %v395
      %v427 = vpack.c.bf16 %v398, %v397
      %v428 = vpack.c.bf16 %v400, %v399
      %v429 = vpack.c.bf16 %v402, %v401
      %v430 = vpack.c.bf16 %v404, %v403
      %v431 = vpack.c.bf16 %v406, %v405
      %v432 = vpack.c.bf16 %v408, %v407
      %v433 = vpack.c.bf16 %v410, %v409
      %v434 = vpack.c.bf16 %v412, %v411
      %v435 = vpack.c.bf16 %v414, %v413
      %v436 = vpack.c.bf16 %v416, %v415
      %v437 = vpack.c.bf16 %v418, %v417
      %v438 = vpack.c.bf16 %v420, %v419
      %v439 = vpack.c.bf16 %v422, %v421
      %v440 = vpack.c.bf16 %v424, %v423
      %v441 = vld [vmem:[%s3] sm:$0xf]
      %v442 = vld [vmem:[%s3 + $0x4] sm:$0xf]
      %v443 = vld [vmem:[%s3 + $0x8] sm:$0xf]
      %v444 = vld [vmem:[%s3 + $0xc] sm:$0xf]
      %v445 = vld [vmem:[%s3 + $0x10] sm:$0xf]
      %v446 = vld [vmem:[%s3 + $0x14] sm:$0xf]
      %v447 = vld [vmem:[%s3 + $0x18] sm:$0xf]
      %v448 = vld [vmem:[%s3 + $0x1c] sm:$0xf]
      %v449 = vld [vmem:[%s3 + $0x20] sm:$0xf]
      %v450 = vld [vmem:[%s3 + $0x24] sm:$0xf]
      %v451 = vld [vmem:[%s3 + $0x28] sm:$0xf]
      %v452 = vld [vmem:[%s3 + $0x2c] sm:$0xf]
      %v453 = vld [vmem:[%s3 + $0x30] sm:$0xf]
      %v454 = vld [vmem:[%s3 + $0x34] sm:$0xf]
      %v455 = vld [vmem:[%s3 + $0x38] sm:$0xf]
      %v456 = vld [vmem:[%s3 + $0x3c] sm:$0xf]
      %v457 = vld [vmem:[%s4] sm:$0x1]
      %v459 = vperm.slane %v457, 0
      %v477 = vunpack.c.l.b16 %v441
      %v478 = vunpack.c.l.b16 %v442
      %v479 = vunpack.c.l.b16 %v443
      %v480 = vunpack.c.l.b16 %v444
      %v481 = vunpack.c.l.b16 %v445
      %v482 = vunpack.c.l.b16 %v446
      %v483 = vunpack.c.l.b16 %v447
      %v484 = vunpack.c.l.b16 %v448
      %v485 = vunpack.c.l.b16 %v449
      %v486 = vunpack.c.l.b16 %v450
      %v487 = vunpack.c.l.b16 %v451
      %v488 = vunpack.c.l.b16 %v452
      %v489 = vunpack.c.l.b16 %v453
      %v490 = vunpack.c.l.b16 %v454
      %v491 = vunpack.c.l.b16 %v455
      %v492 = vunpack.c.l.b16 %v456
      %v493 = vpack.c.b16 %v478, %v477
      %v494 = vpack.c.b16 %v480, %v479
      %v495 = vpack.c.b16 %v482, %v481
      %v496 = vpack.c.b16 %v484, %v483
      %v497 = vpack.c.b16 %v486, %v485
      %v498 = vpack.c.b16 %v488, %v487
      %v499 = vpack.c.b16 %v490, %v489
      %v500 = vpack.c.b16 %v492, %v491
      %509 = vmatpush.bf16.msra.mxu0 %v500
      %510 = vmatpush.bf16.msra.mxu0 %v499
      %511 = vmatpush.bf16.msra.mxu0 %v498
      %512 = vmatpush.bf16.msra.mxu0 %v497
      %513 = vmatpush.bf16.msra.mxu0 %v496
      %514 = vmatpush.bf16.msra.mxu0 %v495
      %515 = vmatpush.bf16.msra.mxu0 %v494
      %516 = vmatpush.bf16.msra.mxu0 %v493
      %517 = vmatmul.bf16.gmra.mxu0 %v425
      %v518 = vpop.f32.mrf.mxu0
      %v519 = vadd.f32 %v459, %v518
      %v520 = vpop.f32.mrf.mxu0
      %v521 = vadd.f32 %v459, %v520
      %522 = vmatmul.bf16.gmra.mxu0 %v426
      %v523 = vpop.f32.mrf.mxu0
      %v524 = vadd.f32 %v459, %v523
      %v525 = vpop.f32.mrf.mxu0
      %v526 = vadd.f32 %v459, %v525
      %527 = vmatmul.bf16.gmra.mxu0 %v427
      %v528 = vpop.f32.mrf.mxu0
      %v529 = vadd.f32 %v459, %v528
      %v530 = vpop.f32.mrf.mxu0
      %v531 = vadd.f32 %v459, %v530
      %532 = vmatmul.bf16.gmra.mxu0 %v428
      %v533 = vpop.f32.mrf.mxu0
      %v534 = vadd.f32 %v459, %v533
      %v535 = vpop.f32.mrf.mxu0
      %v536 = vadd.f32 %v459, %v535
      %537 = vmatmul.bf16.gmra.mxu0 %v429
      %v538 = vpop.f32.mrf.mxu0
      %v539 = vadd.f32 %v459, %v538
      %v540 = vpop.f32.mrf.mxu0
      %v541 = vadd.f32 %v459, %v540
      %542 = vmatmul.bf16.gmra.mxu0 %v430
      %v543 = vpop.f32.mrf.mxu0
      %v544 = vadd.f32 %v459, %v543
      %v545 = vpop.f32.mrf.mxu0
      %v546 = vadd.f32 %v459, %v545
      %547 = vmatmul.bf16.gmra.mxu0 %v431
      %v548 = vpop.f32.mrf.mxu0
      %v549 = vadd.f32 %v459, %v548
      %v550 = vpop.f32.mrf.mxu0
      %v551 = vadd.f32 %v459, %v550
      %552 = vmatmul.bf16.gmra.mxu0 %v432
      %v553 = vpop.f32.mrf.mxu0
      %v554 = vadd.f32 %v459, %v553
      %v555 = vpop.f32.mrf.mxu0
      %v556 = vadd.f32 %v459, %v555
      %557 = vmatmul.bf16.gmra.mxu0 %v433
      %v558 = vpop.f32.mrf.mxu0
      %v559 = vadd.f32 %v459, %v558
      %v560 = vpop.f32.mrf.mxu0
      %v561 = vadd.f32 %v459, %v560
      %562 = vmatmul.bf16.gmra.mxu0 %v434
      %v563 = vpop.f32.mrf.mxu0
      %v564 = vadd.f32 %v459, %v563
      %v565 = vpop.f32.mrf.mxu0
      %v566 = vadd.f32 %v459, %v565
      %567 = vmatmul.bf16.gmra.mxu0 %v435
      %v568 = vpop.f32.mrf.mxu0
      %v569 = vadd.f32 %v459, %v568
      %v570 = vpop.f32.mrf.mxu0
      %v571 = vadd.f32 %v459, %v570
      %572 = vmatmul.bf16.gmra.mxu0 %v436
      %v573 = vpop.f32.mrf.mxu0
      %v574 = vadd.f32 %v459, %v573
      %v575 = vpop.f32.mrf.mxu0
      %v576 = vadd.f32 %v459, %v575
      %577 = vmatmul.bf16.gmra.mxu0 %v437
      %v578 = vpop.f32.mrf.mxu0
      %v579 = vadd.f32 %v459, %v578
      %v580 = vpop.f32.mrf.mxu0
      %v581 = vadd.f32 %v459, %v580
      %582 = vmatmul.bf16.gmra.mxu0 %v438
      %v583 = vpop.f32.mrf.mxu0
      %v584 = vadd.f32 %v459, %v583
      %v585 = vpop.f32.mrf.mxu0
      %v586 = vadd.f32 %v459, %v585
      %587 = vmatmul.bf16.gmra.mxu0 %v439
      %v588 = vpop.f32.mrf.mxu0
      %v589 = vadd.f32 %v459, %v588
      %v590 = vpop.f32.mrf.mxu0
      %v591 = vadd.f32 %v459, %v590
      %592 = vmatmul.bf16.gmra.mxu0 %v440
      %v593 = vpop.f32.mrf.mxu0
      %v594 = vadd.f32 %v459, %v593
      %v595 = vpop.f32.mrf.mxu0
      %v596 = vadd.f32 %v459, %v595
      %597 = vdwg.mxu0
      %598 = vst [vmem:[%s224] sm:$0xff] %v519
      %599 = vst [vmem:[%s224 + $0x8] sm:$0xff] %v521
      %600 = vst [vmem:[%s224 + $0x10] sm:$0xff] %v524
      %601 = vst [vmem:[%s224 + $0x18] sm:$0xff] %v526
      %602 = vst [vmem:[%s224 + $0x20] sm:$0xff] %v529
      %603 = vst [vmem:[%s224 + $0x28] sm:$0xff] %v531
      %604 = vst [vmem:[%s224 + $0x30] sm:$0xff] %v534
      %605 = vst [vmem:[%s224 + $0x38] sm:$0xff] %v536
      %606 = vst [vmem:[%s224 + $0x40] sm:$0xff] %v539
      %607 = vst [vmem:[%s224 + $0x48] sm:$0xff] %v541
      %608 = vst [vmem:[%s224 + $0x50] sm:$0xff] %v544
      %609 = vst [vmem:[%s224 + $0x58] sm:$0xff] %v546
      %610 = vst [vmem:[%s224 + $0x60] sm:$0xff] %v549
      %611 = vst [vmem:[%s224 + $0x68] sm:$0xff] %v551
      %612 = vst [vmem:[%s224 + $0x70] sm:$0xff] %v554
      %613 = vst [vmem:[%s224 + $0x78] sm:$0xff] %v556
      %614 = vst [vmem:[%s224 + $0x80] sm:$0xff] %v559
      %615 = vst [vmem:[%s224 + $0x88] sm:$0xff] %v561
      %616 = vst [vmem:[%s224 + $0x90] sm:$0xff] %v564
      %617 = vst [vmem:[%s224 + $0x98] sm:$0xff] %v566
      %618 = vst [vmem:[%s224 + $0xa0] sm:$0xff] %v569
      %619 = vst [vmem:[%s224 + $0xa8] sm:$0xff] %v571
      %620 = vst [vmem:[%s224 + $0xb0] sm:$0xff] %v574
      %621 = vst [vmem:[%s224 + $0xb8] sm:$0xff] %v576
      %622 = vst [vmem:[%s224 + $0xc0] sm:$0xff] %v579
      %623 = vst [vmem:[%s224 + $0xc8] sm:$0xff] %v581
      %624 = vst [vmem:[%s224 + $0xd0] sm:$0xff] %v584
      %625 = vst [vmem:[%s224 + $0xd8] sm:$0xff] %v586
      %626 = vst [vmem:[%s224 + $0xe0] sm:$0xff] %v589
      %627 = vst [vmem:[%s224 + $0xe8] sm:$0xff] %v591
      %628 = vst [vmem:[%s224 + $0xf0] sm:$0xff] %v594
      %629 = vst [vmem:[%s224 + $0xf8] sm:$0xff] %v596
      %p630 = scmp.lt.s32.totalorder %s16, 1
      %s631 = scalar_select %p630, %s16, 1
      %s632 = smul.addr %s631, 32
      %s633 = smul.addr %s632, 8
      %s634 = scalar_lea.vmem %s5, %s633
      // Predicated region
      $region41: #{scale_forward.3} parent=39 // pred_check
        %p635 = pneg %p144
      $region42: #{scale_forward.3} parent=39 // pred_check_branch
        %637 = sbr.rel (%p635) target = $region44
      $region43: #{scale_forward.3} parent=39 // pred_region
        _
      $region44: #{scale_forward.3} parent=39 // pred_fallthru
        _
    $region40: #{scale_forward.3} parent=5 // pred_fallthru
      _
    %p638 = scmp.le.s32.totalorder 2, %s11
    // Predicated region
    $region45: #{scale_forward.3} parent=5 // pred_check
      %p639 = pneg %p638
    $region46: #{scale_forward.3} parent=5 // pred_check_branch
      %641 = sbr.rel (%p639) target = $region48
    $region47: #{scale_forward.3} parent=5 // pred_region
      %s642 = ssub.s32 %s11, 2
      // Predicated region
      $region49: #{scale_forward.3} parent=47 // pred_check
        %p643 = pneg %p150
      $region50: #{scale_forward.3} parent=47 // pred_check_branch
        %645 = sbr.rel (%p643) target = $region52
      $region51: #{scale_forward.3} parent=47 // pred_region
        %p646 = scmp.lt.s32.totalorder %s17, 1
        %s647 = scalar_select %p646, %s17, 1
        %s648 = smul.addr %s647, 32
        %s649 = smul.addr %s648, 8
        %s650 = scalar_lea.vmem %s5, %s649
      $region52: #{scale_forward.3} parent=47 // pred_fallthru
        _
    $region48: #{scale_forward.3} parent=5 // pred_fallthru
      _
  $region6: #{scale_forward.3} parent=0 // loop_footer
    %s15 = sadd.s32 1, %s11
  $region7: #{scale_forward.3} parent=0 // loop_footer_branch
    %10 = sbr.rel target = $region3
  $region8: #{scale_forward.3} parent=0 // loop_exit
    _

// kernel: scale_forward.2
$region0: #{scale_forward.2}
  #allocation0 [shape = 'u32[]', space=smem, size = 0x4, offset = 0x4, fixed_abs, tag = 'smem constant byte address 0x4 - core index']
  #allocation1 [shape = 'u32[72,128]{1,0:T(1,128)}', space=vmem, size = 0x9000, scoped, tag = 'internal scratch']
  %s0 = inlined_call_operand.vmem [shape: bf16[2,18,18,4], index: 0, kind: input, shape index: {}]
  %s1 = inlined_call_operand.vmem [shape: bf16[36,128], index: 1, kind: input, shape index: {}]
  %s2 = inlined_call_operand.vmem [shape: f32[2,256,128], index: 2, kind: output, shape index: {0}]
  %s3 = inlined_call_operand.vmem [shape: f32[2,128], index: 3, kind: output, shape index: {1}]
  %4 = xla_tuple %s2, %s3
  %s5 = sld [smem:[#allocation0]]
  $region53: #{scale_forward.2} parent=0
    _
  %s7 = ssub.s32 1, %s5
  %s8 = scalar_select 0, %s7, %s5
  loop: start=0, step=1, limit=4
  $region2: #{scale_forward.2} parent=0 // loop_pre_header
    _
  $region3: #{scale_forward.2} parent=0 // loop_header
    %s10 = sphi 0, %s14
    %p11 = scmp.ge.s32.totalorder %s10, 4
    %s20 = sphi 0, %s22
    %s23 = sphi 0, %s20
    %s24 = sphi 0, %s23
    %s40 = sphi 0, %s24
    %s44 = sphi 0, %s44
    %s46 = sphi 0, %s44
    %s47 = sphi 0, %s46
    %s61 = sphi 0, %s47
    %s67 = sphi 0, %s69
    %s70 = sphi 0, %s67
    %s71 = sphi 0, %s70
    %s87 = sphi 0, %s71
    %s91 = sphi 0, %s91
    %s93 = sphi 0, %s91
    %s94 = sphi 0, %s93
    %s108 = sphi 0, %s94
  $region4: #{scale_forward.2} parent=0 // loop_header_branch
    %13 = sbr.rel (%p11) target = $region8
  $region5: #{scale_forward.2} parent=0 // loop_body
    %s15 = ssub.s32 %s10, 1
    %s16 = ssub.s32 %s10, 2
    %s17 = sadd.s32 %s10, 1
    %s18 = ssub.s32 %s10, %s17
    %p19 = scmp.eq.s32.totalorder %s18, 0
    %s21 = sadd.s32 %s20, 1
    %s22 = scalar_select %p19, %s20, %s21
    %p25 = pneg %p19
    %p26 = scmp.eq.s32.totalorder %s10, 1
    %p27 = por %p25, %p26
    %p28 = scmp.ne.s32.totalorder %s20, %s23
    %p29 = scmp.eq.s32.totalorder %s10, 0
    %p30 = por %p28, %p29
    %p31 = scmp.ne.s32.totalorder %s20, %s23
    %p32 = scmp.eq.s32.totalorder %s15, 1
    %p33 = por %p31, %p32
    %p34 = scmp.ne.s32.totalorder %s23, %s24
    %p35 = scmp.eq.s32.totalorder %s15, 0
    %p36 = por %p34, %p35
    %p37 = scmp.ne.s32.totalorder %s23, %s24
    %p38 = scmp.eq.s32.totalorder %s16, 1
    %p39 = por %p37, %p38
    %p41 = scmp.ne.s32.totalorder %s24, %s40
    %p42 = scmp.eq.s32.totalorder %s16, 0
    %p43 = por %p41, %p42
    %s45 = sadd.s32 %s44, 1
    %p48 = scmp.eq.s32.totalorder %s10, 1
    %p49 = scmp.ne.s32.totalorder %s44, %s46
    %p50 = scmp.eq.s32.totalorder %s10, 0
    %p51 = por %p49, %p50
    %p52 = scmp.ne.s32.totalorder %s44, %s46
    %p53 = scmp.eq.s32.totalorder %s15, 1
    %p54 = por %p52, %p53
    %p55 = scmp.ne.s32.totalorder %s46, %s47
    %p56 = scmp.eq.s32.totalorder %s15, 0
    %p57 = por %p55, %p56
    %p58 = scmp.ne.s32.totalorder %s46, %s47
    %p59 = scmp.eq.s32.totalorder %s16, 1
    %p60 = por %p58, %p59
    %p62 = scmp.ne.s32.totalorder %s47, %s61
    %p63 = scmp.eq.s32.totalorder %s16, 0
    %p64 = por %p62, %p63
    %s65 = ssub.s32 %s10, %s17
    %p66 = scmp.eq.s32.totalorder %s65, 0
    %s68 = sadd.s32 %s67, 1
    %s69 = scalar_select %p66, %s67, %s68
    %p72 = pneg %p66
    %p73 = scmp.eq.s32.totalorder %s10, 1
    %p74 = por %p72, %p73
    %p75 = scmp.ne.s32.totalorder %s67, %s70
    %p76 = scmp.eq.s32.totalorder %s10, 0
    %p77 = por %p75, %p76
    %p78 = scmp.ne.s32.totalorder %s67, %s70
    %p79 = scmp.eq.s32.totalorder %s15, 1
    %p80 = por %p78, %p79
    %p81 = scmp.ne.s32.totalorder %s70, %s71
    %p82 = scmp.eq.s32.totalorder %s15, 0
    %p83 = por %p81, %p82
    %p84 = scmp.ne.s32.totalorder %s70, %s71
    %p85 = scmp.eq.s32.totalorder %s16, 1
    %p86 = por %p84, %p85
    %p88 = scmp.ne.s32.totalorder %s71, %s87
    %p89 = scmp.eq.s32.totalorder %s16, 0
    %p90 = por %p88, %p89
    %s92 = sadd.s32 %s91, 1
    %p95 = scmp.eq.s32.totalorder %s10, 1
    %p96 = scmp.ne.s32.totalorder %s91, %s93
    %p97 = scmp.eq.s32.totalorder %s10, 0
    %p98 = por %p96, %p97
    %p99 = scmp.ne.s32.totalorder %s91, %s93
    %p100 = scmp.eq.s32.totalorder %s15, 1
    %p101 = por %p99, %p100
    %p102 = scmp.ne.s32.totalorder %s93, %s94
    %p103 = scmp.eq.s32.totalorder %s15, 0
    %p104 = por %p102, %p103
    %p105 = scmp.ne.s32.totalorder %s93, %s94
    %p106 = scmp.eq.s32.totalorder %s16, 1
    %p107 = por %p105, %p106
    %p109 = scmp.ne.s32.totalorder %s94, %s108
    %p110 = scmp.eq.s32.totalorder %s16, 0
    %p111 = por %p109, %p110
    %p112 = scmp.le.s32.totalorder 1, %s10
    %p113 = scmp.lt.s32.totalorder %s10, 3
    %p114 = pnand %p112, %p113
    %p115 = pneg %p114
    // Predicated region
    $region9: #{scale_forward.2} parent=5 // pred_check
      _
    $region10: #{scale_forward.2} parent=5 // pred_check_branch
      %117 = sbr.rel (%p114) target = $region12
    $region11: #{scale_forward.2} parent=5 // pred_region
      %s118 = ssub.s32 %s10, 1
      // Predicated region
      $region13: #{scale_forward.2} parent=11 // pred_check
        %p119 = pneg %p57
      $region14: #{scale_forward.2} parent=11 // pred_check_branch
        %121 = sbr.rel (%p119) target = $region16
      $region15: #{scale_forward.2} parent=11 // pred_region
        _
      $region16: #{scale_forward.2} parent=11 // pred_fallthru
        _
    $region12: #{scale_forward.2} parent=5 // pred_fallthru
      _
    %p122 = scmp.lt.s32.totalorder %s10, 2
    // Predicated region
    $region17: #{scale_forward.2} parent=5 // pred_check
      %p123 = pneg %p122
    $region18: #{scale_forward.2} parent=5 // pred_check_branch
      %125 = sbr.rel (%p123) target = $region20
    $region19: #{scale_forward.2} parent=5 // pred_region
      // Predicated region
      $region21: #{scale_forward.2} parent=19 // pred_check
        %p126 = pneg %p30
      $region22: #{scale_forward.2} parent=19 // pred_check_branch
        %128 = sbr.rel (%p126) target = $region24
      $region23: #{scale_forward.2} parent=19 // pred_region
        %p129 = scmp.lt.s32.totalorder %s10, 1
        %s130 = scalar_select %p129, %s10, 1
        %s131 = smul.addr %s130, 54
        %s132 = smul.addr %s131, 4
        %s133 = scalar_lea.vmem %s0, %s132
      $region24: #{scale_forward.2} parent=19 // pred_fallthru
        _
    $region20: #{scale_forward.2} parent=5 // pred_fallthru
      _
    %p134 = scmp.le.s32.totalorder 1, %s10
    %p135 = scmp.lt.s32.totalorder %s10, 3
    %p136 = pnand %p134, %p135
    %p137 = pneg %p136
    // Predicated region
    $region25: #{scale_forward.2} parent=5 // pred_check
      _
    $region26: #{scale_forward.2} parent=5 // pred_check_branch
      %139 = sbr.rel (%p136) target = $region28
    $region27: #{scale_forward.2} parent=5 // pred_region
      %s140 = ssub.s32 %s10, 1
      %p141 = scmp.lt.s32.totalorder %s15, 1
      %s142 = scalar_select %p141, %s15, 1
      %s143 = smul.addr %s142, 54
      %s144 = smul.addr %s143, 4
      %s145 = scalar_lea.vmem %s0, %s144
      %p146 = pneg %p36
      %p147 = pneg %p33
      %p148 = pneg %p57
      %p149 = pneg %p54
      %p150 = pneg %p83
      %p151 = pneg %p80
      %p152 = scmp.lt.s32.totalorder %s15, 1
      %s153 = scalar_select %p152, %s15, 1
      %s154 = smul.addr %s153, 32
      %s155 = smul.addr %s154, 8
      %s156 = scalar_lea.vmem %s2, %s155
      %p157 = pneg %p104
      %p158 = pneg %p101
      %p159 = scmp.lt.s32.totalorder %s15, 1
      %s160 = scalar_select %p159, %s15, 1
      %s161 = smul.addr %s160, 54
      %s162 = smul.addr %s161, 4
      %s163 = scalar_lea.vmem %s0, %s162
      %p164 = scmp.lt.s32.totalorder %s15, 1
      %s165 = scalar_select %p164, %s15, 1
      %s166 = smul.addr %s165, 32
      %s167 = smul.addr %s166, 8
      %s168 = scalar_lea.vmem %s2, %s167
      %p170 = scmp.eq.s32.totalorder %s15, 0
      // Predicated region
      $region29: #{scale_forward.2} parent=27 // pred_check
        %p171 = pneg %p170
      $region30: #{scale_forward.2} parent=27 // pred_check_branch
        %173 = sbr.rel (%p171) target = $region32
      $region31: #{scale_forward.2} parent=27 // pred_region
        %174 = vst [vmem:[%s3] sm:$0x3] 0.0
      $region32: #{scale_forward.2} parent=27 // pred_fallthru
        _
      %v175 = vld [vmem:[%s163] sm:$0xf]
      %v176 = vld [vmem:[%s163 + $0x4] sm:$0xf]
      %v177 = vld [vmem:[%s163 + $0x8] sm:$0x1]
      %v178 = vld [vmem:[%s163 + $0xc] sm:$0xf]
      %v179 = vld [vmem:[%s163 + $0x10] sm:$0xf]
      %v180 = vld [vmem:[%s163 + $0x14] sm:$0x1]
      %v181 = vld [vmem:[%s163 + $0x18] sm:$0xf]
      %v182 = vld [vmem:[%s163 + $0x1c] sm:$0xf]
      %v183 = vld [vmem:[%s163 + $0x20] sm:$0x1]
      %v184 = vld [vmem:[%s163 + $0x24] sm:$0xf]
      %v185 = vld [vmem:[%s163 + $0x28] sm:$0xf]
      %v186 = vld [vmem:[%s163 + $0x2c] sm:$0x1]
      %v187 = vld [vmem:[%s163 + $0x30] sm:$0xf]
      %v188 = vld [vmem:[%s163 + $0x34] sm:$0xf]
      %v189 = vld [vmem:[%s163 + $0x38] sm:$0x1]
      %v190 = vld [vmem:[%s163 + $0x3c] sm:$0xf]
      %v191 = vld [vmem:[%s163 + $0x40] sm:$0xf]
      %v192 = vld [vmem:[%s163 + $0x44] sm:$0x1]
      %v193 = vld [vmem:[%s163 + $0x48] sm:$0xf]
      %v194 = vld [vmem:[%s163 + $0x4c] sm:$0xf]
      %v195 = vld [vmem:[%s163 + $0x50] sm:$0x1]
      %v196 = vld [vmem:[%s163 + $0x54] sm:$0xf]
      %v197 = vld [vmem:[%s163 + $0x58] sm:$0xf]
      %v198 = vld [vmem:[%s163 + $0x5c] sm:$0x1]
      %v199 = vld [vmem:[%s163 + $0x60] sm:$0xf]
      %v200 = vld [vmem:[%s163 + $0x64] sm:$0xf]
      %v201 = vld [vmem:[%s163 + $0x68] sm:$0x1]
      %v202 = vld [vmem:[%s163 + $0x6c] sm:$0xf]
      %v203 = vld [vmem:[%s163 + $0x70] sm:$0xf]
      %v204 = vld [vmem:[%s163 + $0x74] sm:$0x1]
      %v205 = vld [vmem:[%s163 + $0x78] sm:$0xf]
      %v206 = vld [vmem:[%s163 + $0x7c] sm:$0xf]
      %v207 = vld [vmem:[%s163 + $0x80] sm:$0x1]
      %v208 = vld [vmem:[%s163 + $0x84] sm:$0xf]
      %v209 = vld [vmem:[%s163 + $0x88] sm:$0xf]
      %v210 = vld [vmem:[%s163 + $0x8c] sm:$0x1]
      %v211 = vld [vmem:[%s163 + $0x90] sm:$0xf]
      %v212 = vld [vmem:[%s163 + $0x94] sm:$0xf]
      %v213 = vld [vmem:[%s163 + $0x98] sm:$0x1]
      %v214 = vld [vmem:[%s163 + $0x9c] sm:$0xf]
      %v215 = vld [vmem:[%s163 + $0xa0] sm:$0xf]
      %v216 = vld [vmem:[%s163 + $0xa4] sm:$0x1]
      %v217 = vld [vmem:[%s163 + $0xa8] sm:$0xf]
      %v218 = vld [vmem:[%s163 + $0xac] sm:$0xf]
      %v219 = vld [vmem:[%s163 + $0xb0] sm:$0x1]
      %v220 = vld [vmem:[%s163 + $0xb4] sm:$0xf]
      %v221 = vld [vmem:[%s163 + $0xb8] sm:$0xf]
      %v222 = vld [vmem:[%s163 + $0xbc] sm:$0x1]
      %v223 = vld [vmem:[%s163 + $0xc0] sm:$0xf]
      %v224 = vld [vmem:[%s163 + $0xc4] sm:$0xf]
      %v225 = vld [vmem:[%s163 + $0xc8] sm:$0x1]
      %v226 = vld [vmem:[%s163 + $0xcc] sm:$0xf]
      %v227 = vld [vmem:[%s163 + $0xd0] sm:$0xf]
      %v228 = vld [vmem:[%s163 + $0xd4] sm:$0x1]
      %vm229 = vsmask.f32 3328
      %vm230 = vsmask.f32 7440
      %vm231 = vmor %vm229, %vm230
      %v233 = vshrl.u32 %v175, 16
      %v235 = vrot.slane %v233, 4
      %v236 = vshll.u32 %v175, 16
      %v238 = vrot.slane %v236, 5
      %v239 = vor.u32 %v235, %v238
      %v240 = vrot.slane %v239, 4
      %v242 = vshll.u32 %v176, 16
      %v244 = vrot.slane %v242, 5
      %v245 = vsel %vm231, %v240, %v244
      %v246 = vshrl.u32 %v176, 16
      %v248 = vrot.slane %v246, 4
      %v249 = vor.u32 %v248, %v244
      %v250 = vrot.slane %v249, 4
      %v252 = vshll.u32 %v177, 16
      %v254 = vrot.slane %v252, 5
      %v255 = vsel %vm231, %v250, %v254
      %v257 = vshrl.u32 %v178, 16
      %v259 = vrot.slane %v257, 4
      %v260 = vshll.u32 %v178, 16
      %v262 = vrot.slane %v260, 5
      %v263 = vor.u32 %v259, %v262
      %v264 = vrot.slane %v263, 4
      %v266 = vshll.u32 %v179, 16
      %v268 = vrot.slane %v266, 5
      %v269 = vsel %vm231, %v264, %v268
      %v270 = vshrl.u32 %v179, 16
      %v272 = vrot.slane %v270, 4
      %v273 = vor.u32 %v272, %v268
      %v274 = vrot.slane %v273, 4
      %v276 = vshll.u32 %v180, 16
      %v278 = vrot.slane %v276, 5
      %v279 = vsel %vm231, %v274, %v278
      %v281 = vshrl.u32 %v181, 16
      %v283 = vrot.slane %v281, 4
      %v284 = vshll.u32 %v181, 16
      %v286 = vrot.slane %v284, 5
      %v287 = vor.u32 %v283, %v286
      %v288 = vrot.slane %v287, 4
      %v290 = vshll.u32 %v182, 16
      %v292 = vrot.slane %v290, 5
      %v293 = vsel %vm231, %v288, %v292
      %v294 = vshrl.u32 %v182, 16
      %v296 = vrot.slane %v294, 4
      %v297 = vor.u32 %v296, %v292
      %v298 = vrot.slane %v297, 4
      %v300 = vshll.u32 %v183, 16
      %v302 = vrot.slane %v300, 5
      %v303 = vsel %vm231, %v298, %v302
      %v305 = vshrl.u32 %v184, 16
      %v307 = vrot.slane %v305, 4
      %v308 = vshll.u32 %v184, 16
      %v310 = vrot.slane %v308, 5
      %v311 = vor.u32 %v307, %v310
      %v312 = vrot.slane %v311, 4
      %v314 = vshll.u32 %v185, 16
      %v316 = vrot.slane %v314, 5
      %v317 = vsel %vm231, %v312, %v316
      %v318 = vshrl.u32 %v185, 16
      %v320 = vrot.slane %v318, 4
      %v321 = vor.u32 %v320, %v316
      %v322 = vrot.slane %v321, 4
      %v324 = vshll.u32 %v186, 16
      %v326 = vrot.slane %v324, 5
      %v327 = vsel %vm231, %v322, %v326
      %v329 = vshrl.u32 %v187, 16
      %v331 = vrot.slane %v329, 4
      %v332 = vshll.u32 %v187, 16
      %v334 = vrot.slane %v332, 5
      %v335 = vor.u32 %v331, %v334
      %v336 = vrot.slane %v335, 4
      %v338 = vshll.u32 %v188, 16
      %v340 = vrot.slane %v338, 5
      %v341 = vsel %vm231, %v336, %v340
      %v342 = vshrl.u32 %v188, 16
      %v344 = vrot.slane %v342, 4
      %v345 = vor.u32 %v344, %v340
      %v346 = vrot.slane %v345, 4
      %v348 = vshll.u32 %v189, 16
      %v350 = vrot.slane %v348, 5
      %v351 = vsel %vm231, %v346, %v350
      %v353 = vshrl.u32 %v190, 16
      %v355 = vrot.slane %v353, 4
      %v356 = vshll.u32 %v190, 16
      %v358 = vrot.slane %v356, 5
      %v359 = vor.u32 %v355, %v358
      %v360 = vrot.slane %v359, 4
      %v362 = vshll.u32 %v191, 16
      %v364 = vrot.slane %v362, 5
      %v365 = vsel %vm231, %v360, %v364
      %v366 = vshrl.u32 %v191, 16
      %v368 = vrot.slane %v366, 4
      %v369 = vor.u32 %v368, %v364
      %v370 = vrot.slane %v369, 4
      %v372 = vshll.u32 %v192, 16
      %v374 = vrot.slane %v372, 5
      %v375 = vsel %vm231, %v370, %v374
      %v377 = vshrl.u32 %v193, 16
      %v379 = vrot.slane %v377, 4
      %v380 = vshll.u32 %v193, 16
      %v382 = vrot.slane %v380, 5
      %v383 = vor.u32 %v379, %v382
      %v384 = vrot.slane %v383, 4
      %v386 = vshll.u32 %v194, 16
      %v388 = vrot.slane %v386, 5
      %v389 = vsel %vm231, %v384, %v388
      %v390 = vshrl.u32 %v194, 16
      %v392 = vrot.slane %v390, 4
      %v393 = vor.u32 %v392, %v388
      %v394 = vrot.slane %v393, 4
      %v396 = vshll.u32 %v195, 16
      %v398 = vrot.slane %v396, 5
      %v399 = vsel %vm231, %v394, %v398
      %v401 = vshrl.u32 %v196, 16
      %v403 = vrot.slane %v401, 4
      %v404 = vshll.u32 %v196, 16
      %v406 = vrot.slane %v404, 5
      %v407 = vor.u32 %v403, %v406
      %v408 = vrot.slane %v407, 4
      %v410 = vshll.u32 %v197, 16
      %v412 = vrot.slane %v410, 5
      %v413 = vsel %vm231, %v408, %v412
      %v414 = vshrl.u32 %v197, 16
      %v416 = vrot.slane %v414, 4
      %v417 = vor.u32 %v416, %v412
      %v418 = vrot.slane %v417, 4
      %v420 = vshll.u32 %v198, 16
      %v422 = vrot.slane %v420, 5
      %v423 = vsel %vm231, %v418, %v422
      %v425 = vshrl.u32 %v199, 16
      %v427 = vrot.slane %v425, 4
      %v428 = vshll.u32 %v199, 16
      %v430 = vrot.slane %v428, 5
      %v431 = vor.u32 %v427, %v430
      %v432 = vrot.slane %v431, 4
      %v434 = vshll.u32 %v200, 16
      %v436 = vrot.slane %v434, 5
      %v437 = vsel %vm231, %v432, %v436
      %v438 = vshrl.u32 %v200, 16
      %v440 = vrot.slane %v438, 4
      %v441 = vor.u32 %v440, %v436
      %v442 = vrot.slane %v441, 4
      %v444 = vshll.u32 %v201, 16
      %v446 = vrot.slane %v444, 5
      %v447 = vsel %vm231, %v442, %v446
      %v449 = vshrl.u32 %v202, 16
      %v451 = vrot.slane %v449, 4
      %v452 = vshll.u32 %v202, 16
      %v454 = vrot.slane %v452, 5
      %v455 = vor.u32 %v451, %v454
      %v456 = vrot.slane %v455, 4
      %v458 = vshll.u32 %v203, 16
      %v460 = vrot.slane %v458, 5
      %v461 = vsel %vm231, %v456, %v460
      %v462 = vshrl.u32 %v203, 16
      %v464 = vrot.slane %v462, 4
      %v465 = vor.u32 %v464, %v460
      %v466 = vrot.slane %v465, 4
      %v468 = vshll.u32 %v204, 16
      %v470 = vrot.slane %v468, 5
      %v471 = vsel %vm231, %v466, %v470
      %v473 = vshrl.u32 %v205, 16
      %v475 = vrot.slane %v473, 4
      %v476 = vshll.u32 %v205, 16
      %v478 = vrot.slane %v476, 5
      %v479 = vor.u32 %v475, %v478
      %v480 = vrot.slane %v479, 4
      %v482 = vshll.u32 %v206, 16
      %v484 = vrot.slane %v482, 5
      %v485 = vsel %vm231, %v480, %v484
      %v486 = vshrl.u32 %v206, 16
      %v488 = vrot.slane %v486, 4
      %v489 = vor.u32 %v488, %v484
      %v490 = vrot.slane %v489, 4
      %v492 = vshll.u32 %v207, 16
      %v494 = vrot.slane %v492, 5
      %v495 = vsel %vm231, %v490, %v494
      %v497 = vshrl.u32 %v208, 16
      %v499 = vrot.slane %v497, 4
      %v500 = vshll.u32 %v208, 16
      %v502 = vrot.slane %v500, 5
      %v503 = vor.u32 %v499, %v502
      %v504 = vrot.slane %v503, 4
      %v506 = vshll.u32 %v209, 16
      %v508 = vrot.slane %v506, 5
      %v509 = vsel %vm231, %v504, %v508
      %v510 = vshrl.u32 %v209, 16
      %v512 = vrot.slane %v510, 4
      %v513 = vor.u32 %v512, %v508
      %v514 = vrot.slane %v513, 4
      %v516 = vshll.u32 %v210, 16
      %v518 = vrot.slane %v516, 5
      %v519 = vsel %vm231, %v514, %v518
      %v521 = vshrl.u32 %v211, 16
      %v523 = vrot.slane %v521, 4
      %v524 = vshll.u32 %v211, 16
      %v526 = vrot.slane %v524, 5
      %v527 = vor.u32 %v523, %v526
      %v528 = vrot.slane %v527, 4
      %v530 = vshll.u32 %v212, 16
      %v532 = vrot.slane %v530, 5
      %v533 = vsel %vm231, %v528, %v532
      %v534 = vshrl.u32 %v212, 16
      %v536 = vrot.slane %v534, 4
      %v537 = vor.u32 %v536, %v532
      %v538 = vrot.slane %v537, 4
      %v540 = vshll.u32 %v213, 16
      %v542 = vrot.slane %v540, 5
      %v543 = vsel %vm231, %v538, %v542
      %v545 = vshrl.u32 %v214, 16
      %v547 = vrot.slane %v545, 4
      %v548 = vshll.u32 %v214, 16
      %v550 = vrot.slane %v548, 5
      %v551 = vor.u32 %v547, %v550
      %v552 = vrot.slane %v551, 4
      %v554 = vshll.u32 %v215, 16
      %v556 = vrot.slane %v554, 5
      %v557 = vsel %vm231, %v552, %v556
      %v558 = vshrl.u32 %v215, 16
      %v560 = vrot.slane %v558, 4
      %v561 = vor.u32 %v560, %v556
      %v562 = vrot.slane %v561, 4
      %v564 = vshll.u32 %v216, 16
      %v566 = vrot.slane %v564, 5
      %v567 = vsel %vm231, %v562, %v566
      %v569 = vshrl.u32 %v217, 16
      %v571 = vrot.slane %v569, 4
      %v572 = vshll.u32 %v217, 16
      %v574 = vrot.slane %v572, 5
      %v575 = vor.u32 %v571, %v574
      %v576 = vrot.slane %v575, 4
      %v578 = vshll.u32 %v218, 16
      %v580 = vrot.slane %v578, 5
      %v581 = vsel %vm231, %v576, %v580
      %v582 = vshrl.u32 %v218, 16
      %v584 = vrot.slane %v582, 4
      %v585 = vor.u32 %v584, %v580
      %v586 = vrot.slane %v585, 4
      %v588 = vshll.u32 %v219, 16
      %v590 = vrot.slane %v588, 5
      %v591 = vsel %vm231, %v586, %v590
      %v593 = vshrl.u32 %v220, 16
      %v595 = vrot.slane %v593, 4
      %v596 = vshll.u32 %v220, 16
      %v598 = vrot.slane %v596, 5
      %v599 = vor.u32 %v595, %v598
      %v600 = vrot.slane %v599, 4
      %v602 = vshll.u32 %v221, 16
      %v604 = vrot.slane %v602, 5
      %v605 = vsel %vm231, %v600, %v604
      %v606 = vshrl.u32 %v221, 16
      %v608 = vrot.slane %v606, 4
      %v609 = vor.u32 %v608, %v604
      %v610 = vrot.slane %v609, 4
      %v612 = vshll.u32 %v222, 16
      %v614 = vrot.slane %v612, 5
      %v615 = vsel %vm231, %v610, %v614
      %vm664 = vcmask 1042432
      %vm665 = vcmask 1046532
      %vm666 = vmor %vm664, %vm665
      %v667 = vrot.slane %v175, 5
      %v668 = vrot.slane %v667, 4
      %v669 = vrot.slane %v176, 5
      %v670 = vsel %vm666, %v668, %v669
      %v671 = vrot.slane %v669, 4
      %v672 = vrot.slane %v177, 5
      %v673 = vsel %vm666, %v671, %v672
      %v674 = vrot.slane %v178, 5
      %v675 = vrot.slane %v674, 4
      %v676 = vrot.slane %v179, 5
      %v677 = vsel %vm666, %v675, %v676
      %v678 = vrot.slane %v676, 4
      %v679 = vrot.slane %v180, 5
      %v680 = vsel %vm666, %v678, %v679
      %v681 = vrot.slane %v181, 5
      %v682 = vrot.slane %v681, 4
      %v683 = vrot.slane %v182, 5
      %v684 = vsel %vm666, %v682, %v683
      %v685 = vrot.slane %v683, 4
      %v686 = vrot.slane %v183, 5
      %v687 = vsel %vm666, %v685, %v686
      %v688 = vrot.slane %v184, 5
      %v689 = vrot.slane %v688, 4
      %v690 = vrot.slane %v185, 5
      %v691 = vsel %vm666, %v689, %v690
      %v692 = vrot.slane %v690, 4
      %v693 = vrot.slane %v186, 5
      %v694 = vsel %vm666, %v692, %v693
      %v695 = vrot.slane %v187, 5
      %v696 = vrot.slane %v695, 4
      %v697 = vrot.slane %v188, 5
      %v698 = vsel %vm666, %v696, %v697
      %v699 = vrot.slane %v697, 4
      %v700 = vrot.slane %v189, 5
      %v701 = vsel %vm666, %v699, %v700
      %v702 = vrot.slane %v190, 5
      %v703 = vrot.slane %v702, 4
      %v704 = vrot.slane %v191, 5
      %v705 = vsel %vm666, %v703, %v704
      %v706 = vrot.slane %v704, 4
      %v707 = vrot.slane %v192, 5
      %v708 = vsel %vm666, %v706, %v707
      %v709 = vrot.slane %v193, 5
      %v710 = vrot.slane %v709, 4
      %v711 = vrot.slane %v194, 5
      %v712 = vsel %vm666, %v710, %v711
      %v713 = vrot.slane %v711, 4
      %v714 = vrot.slane %v195, 5
      %v715 = vsel %vm666, %v713, %v714
      %v716 = vrot.slane %v196, 5
      %v717 = vrot.slane %v716, 4
      %v718 = vrot.slane %v197, 5
      %v719 = vsel %vm666, %v717, %v718
      %v720 = vrot.slane %v718, 4
      %v721 = vrot.slane %v198, 5
      %v722 = vsel %vm666, %v720, %v721
      %v723 = vrot.slane %v199, 5
      %v724 = vrot.slane %v723, 4
      %v725 = vrot.slane %v200, 5
      %v726 = vsel %vm666, %v724, %v725
      %v727 = vrot.slane %v725, 4
      %v728 = vrot.slane %v201, 5
      %v729 = vsel %vm666, %v727, %v728
      %v730 = vrot.slane %v202, 5
      %v731 = vrot.slane %v730, 4
      %v732 = vrot.slane %v203, 5
      %v733 = vsel %vm666, %v731, %v732
      %v734 = vrot.slane %v732, 4
      %v735 = vrot.slane %v204, 5
      %v736 = vsel %vm666, %v734, %v735
      %v737 = vrot.slane %v205, 5
      %v738 = vrot.slane %v737, 4
      %v739 = vrot.slane %v206, 5
      %v740 = vsel %vm666, %v738, %v739
      %v741 = vrot.slane %v739, 4
      %v742 = vrot.slane %v207, 5
      %v743 = vsel %vm666, %v741, %v742
      %v744 = vrot.slane %v208, 5
      %v745 = vrot.slane %v744, 4
      %v746 = vrot.slane %v209, 5
      %v747 = vsel %vm666, %v745, %v746
      %v748 = vrot.slane %v746, 4
      %v749 = vrot.slane %v210, 5
      %v750 = vsel %vm666, %v748, %v749
      %v751 = vrot.slane %v211, 5
      %v752 = vrot.slane %v751, 4
      %v753 = vrot.slane %v212, 5
      %v754 = vsel %vm666, %v752, %v753
      %v755 = vrot.slane %v753, 4
      %v756 = vrot.slane %v213, 5
      %v757 = vsel %vm666, %v755, %v756
      %v758 = vrot.slane %v214, 5
      %v759 = vrot.slane %v758, 4
      %v760 = vrot.slane %v215, 5
      %v761 = vsel %vm666, %v759, %v760
      %v762 = vrot.slane %v760, 4
      %v763 = vrot.slane %v216, 5
      %v764 = vsel %vm666, %v762, %v763
      %v765 = vrot.slane %v217, 5
      %v766 = vrot.slane %v765, 4
      %v767 = vrot.slane %v218, 5
      %v768 = vsel %vm666, %v766, %v767
      %v769 = vrot.slane %v767, 4
      %v770 = vrot.slane %v219, 5
      %v771 = vsel %vm666, %v769, %v770
      %v772 = vrot.slane %v220, 5
      %v773 = vrot.slane %v772, 4
      %v774 = vrot.slane %v221, 5
      %v775 = vsel %vm666, %v773, %v774
      %v776 = vrot.slane %v774, 4
      %v777 = vrot.slane %v222, 5
      %v778 = vsel %vm666, %v776, %v777
      %v780 = vshrl.u32 %v223, 16
      %v782 = vrot.slane %v780, 4
      %v783 = vshll.u32 %v223, 16
      %v785 = vrot.slane %v783, 5
      %v786 = vor.u32 %v782, %v785
      %v787 = vrot.slane %v786, 4
      %v789 = vshll.u32 %v224, 16
      %v791 = vrot.slane %v789, 5
      %v792 = vsel %vm231, %v787, %v791
      %v793 = vshrl.u32 %v224, 16
      %v795 = vrot.slane %v793, 4
      %v796 = vor.u32 %v795, %v791
      %v797 = vrot.slane %v796, 4
      %v799 = vshll.u32 %v225, 16
      %v801 = vrot.slane %v799, 5
      %v802 = vsel %vm231, %v797, %v801
      %v806 = vrot.slane %v223, 5
      %v807 = vrot.slane %v806, 4
      %v808 = vrot.slane %v224, 5
      %v809 = vsel %vm666, %v807, %v808
      %v810 = vrot.slane %v808, 4
      %v811 = vrot.slane %v225, 5
      %v812 = vsel %vm666, %v810, %v811
      %v814 = vshrl.u32 %v226, 16
      %v816 = vrot.slane %v814, 4
      %v817 = vshll.u32 %v226, 16
      %v819 = vrot.slane %v817, 5
      %v820 = vor.u32 %v816, %v819
      %v821 = vrot.slane %v820, 4
      %v823 = vshll.u32 %v227, 16
      %v825 = vrot.slane %v823, 5
      %v826 = vsel %vm231, %v821, %v825
      %v827 = vshrl.u32 %v227, 16
      %v829 = vrot.slane %v827, 4
      %v830 = vor.u32 %v829, %v825
      %v831 = vrot.slane %v830, 4
      %v833 = vshll.u32 %v228, 16
      %v835 = vrot.slane %v833, 5
      %v836 = vsel %vm231, %v831, %v835
      %v840 = vrot.slane %v226, 5
      %v841 = vrot.slane %v840, 4
      %v842 = vrot.slane %v227, 5
      %v843 = vsel %vm666, %v841, %v842
      %v844 = vrot.slane %v842, 4
      %v845 = vrot.slane %v228, 5
      %v846 = vsel %vm666, %v844, %v845
      %v847 = vunpack.c.l.b16 %v175
      %v848 = vunpack.c.l.b16 %v176
      %v849 = vunpack.c.l.b16 %v178
      %v850 = vunpack.c.l.b16 %v179
      %v851 = vunpack.c.l.b16 %v181
      %v852 = vunpack.c.l.b16 %v182
      %v853 = vunpack.c.l.b16 %v184
      %v854 = vunpack.c.l.b16 %v185
      %v855 = vunpack.c.l.b16 %v187
      %v856 = vunpack.c.l.b16 %v188
      %v857 = vunpack.c.l.b16 %v190
      %v858 = vunpack.c.l.b16 %v191
      %v859 = vunpack.c.l.b16 %v193
      %v860 = vunpack.c.l.b16 %v194
      %v861 = vunpack.c.l.b16 %v196
      %v862 = vunpack.c.l.b16 %v197
      %v863 = vunpack.c.l.b16 %v199
      %v864 = vunpack.c.l.b16 %v200
      %v865 = vunpack.c.l.b16 %v202
      %v866 = vunpack.c.l.b16 %v203
      %v867 = vunpack.c.l.b16 %v205
      %v868 = vunpack.c.l.b16 %v206
      %v869 = vunpack.c.l.b16 %v208
      %v870 = vunpack.c.l.b16 %v209
      %v871 = vunpack.c.l.b16 %v211
      %v872 = vunpack.c.l.b16 %v212
      %v873 = vunpack.c.l.b16 %v214
      %v874 = vunpack.c.l.b16 %v215
      %v875 = vunpack.c.l.b16 %v217
      %v876 = vunpack.c.l.b16 %v218
      %v877 = vunpack.c.l.b16 %v220
      %v878 = vunpack.c.l.b16 %v221
      %v879 = vpack.c.b16 %v848, %v847
      %v880 = vpack.c.b16 %v850, %v849
      %v881 = vpack.c.b16 %v852, %v851
      %v882 = vpack.c.b16 %v854, %v853
      %v883 = vpack.c.b16 %v856, %v855
      %v884 = vpack.c.b16 %v858, %v857
      %v885 = vpack.c.b16 %v860, %v859
      %v886 = vpack.c.b16 %v862, %v861
      %v887 = vpack.c.b16 %v864, %v863
      %v888 = vpack.c.b16 %v866, %v865
      %v889 = vpack.c.b16 %v868, %v867
      %v890 = vpack.c.b16 %v870, %v869
      %v891 = vpack.c.b16 %v872, %v871
      %v892 = vpack.c.b16 %v874, %v873
      %v893 = vpack.c.b16 %v876, %v875
      %v894 = vpack.c.b16 %v878, %v877
      %v895 = vunpack.c.l.b16 %v245
      %v896 = vunpack.c.l.b16 %v255
      %v897 = vunpack.c.l.b16 %v269
      %v898 = vunpack.c.l.b16 %v279
      %v899 = vunpack.c.l.b16 %v293
      %v900 = vunpack.c.l.b16 %v303
      %v901 = vunpack.c.l.b16 %v317
      %v902 = vunpack.c.l.b16 %v327
      %v903 = vunpack.c.l.b16 %v341
      %v904 = vunpack.c.l.b16 %v351
      %v905 = vunpack.c.l.b16 %v365
      %v906 = vunpack.c.l.b16 %v375
      %v907 = vunpack.c.l.b16 %v389
      %v908 = vunpack.c.l.b16 %v399
      %v909 = vunpack.c.l.b16 %v413
      %v910 = vunpack.c.l.b16 %v423
      %v911 = vunpack.c.l.b16 %v437
      %v912 = vunpack.c.l.b16 %v447
      %v913 = vunpack.c.l.b16 %v461
      %v914 = vunpack.c.l.b16 %v471
      %v915 = vunpack.c.l.b16 %v485
      %v916 = vunpack.c.l.b16 %v495
      %v917 = vunpack.c.l.b16 %v509
      %v918 = vunpack.c.l.b16 %v519
      %v919 = vunpack.c.l.b16 %v533
      %v920 = vunpack.c.l.b16 %v543
      %v921 = vunpack.c.l.b16 %v557
      %v922 = vunpack.c.l.b16 %v567
      %v923 = vunpack.c.l.b16 %v581
      %v924 = vunpack.c.l.b16 %v591
      %v925 = vunpack.c.l.b16 %v605
      %v926 = vunpack.c.l.b16 %v615
      %v927 = vpack.c.b16 %v896, %v895
      %v928 = vpack.c.b16 %v898, %v897
      %v929 = vpack.c.b16 %v900, %v899
      %v930 = vpack.c.b16 %v902, %v901
      %v931 = vpack.c.b16 %v904, %v903
      %v932 = vpack.c.b16 %v906, %v905
      %v933 = vpack.c.b16 %v908, %v907
      %v934 = vpack.c.b16 %v910, %v909
      %v935 = vpack.c.b16 %v912, %v911
      %v936 = vpack.c.b16 %v914, %v913
      %v937 = vpack.c.b16 %v916, %v915
      %v938 = vpack.c.b16 %v918, %v917
      %v939 = vpack.c.b16 %v920, %v919
      %v940 = vpack.c.b16 %v922, %v921
      %v941 = vpack.c.b16 %v924, %v923
      %v942 = vpack.c.b16 %v926, %v925
      %943 = vrot.lane.b32.xlu0 %v927, 4
      %v944 = vpop.permute.xlu0 %943
      %945 = vrot.lane.b32.xlu0 %v928, 4
      %v946 = vpop.permute.xlu0 %945
      %947 = vrot.lane.b32.xlu0 %v929, 4
      %v948 = vpop.permute.xlu0 %947
      %949 = vrot.lane.b32.xlu0 %v930, 4
      %v950 = vpop.permute.xlu0 %949
      %951 = vrot.lane.b32.xlu0 %v931, 4
      %v952 = vpop.permute.xlu0 %951
      %953 = vrot.lane.b32.xlu0 %v932, 4
      %v954 = vpop.permute.xlu0 %953
      %955 = vrot.lane.b32.xlu0 %v933, 4
      %v956 = vpop.permute.xlu0 %955
      %957 = vrot.lane.b32.xlu0 %v934, 4
      %v958 = vpop.permute.xlu0 %957
      %959 = vrot.lane.b32.xlu0 %v935, 4
      %v960 = vpop.permute.xlu0 %959
      %961 = vrot.lane.b32.xlu0 %v936, 4
      %v962 = vpop.permute.xlu0 %961
      %963 = vrot.lane.b32.xlu0 %v937, 4
      %v964 = vpop.permute.xlu0 %963
      %965 = vrot.lane.b32.xlu0 %v938, 4
      %v966 = vpop.permute.xlu0 %965
      %967 = vrot.lane.b32.xlu0 %v939, 4
      %v968 = vpop.permute.xlu0 %967
      %969 = vrot.lane.b32.xlu0 %v940, 4
      %v970 = vpop.permute.xlu0 %969
      %971 = vrot.lane.b32.xlu0 %v941, 4
      %v972 = vpop.permute.xlu0 %971
      %973 = vrot.lane.b32.xlu0 %v942, 4
      %v974 = vpop.permute.xlu0 %973
      %v975 = vunpack.c.l.b16 %v670
      %v976 = vunpack.c.l.b16 %v673
      %v977 = vunpack.c.l.b16 %v677
      %v978 = vunpack.c.l.b16 %v680
      %v979 = vunpack.c.l.b16 %v684
      %v980 = vunpack.c.l.b16 %v687
      %v981 = vunpack.c.l.b16 %v691
      %v982 = vunpack.c.l.b16 %v694
      %v983 = vunpack.c.l.b16 %v698
      %v984 = vunpack.c.l.b16 %v701
      %v985 = vunpack.c.l.b16 %v705
      %v986 = vunpack.c.l.b16 %v708
      %v987 = vunpack.c.l.b16 %v712
      %v988 = vunpack.c.l.b16 %v715
      %v989 = vunpack.c.l.b16 %v719
      %v990 = vunpack.c.l.b16 %v722
      %v991 = vunpack.c.l.b16 %v726
      %v992 = vunpack.c.l.b16 %v729
      %v993 = vunpack.c.l.b16 %v733
      %v994 = vunpack.c.l.b16 %v736
      %v995 = vunpack.c.l.b16 %v740
      %v996 = vunpack.c.l.b16 %v743
      %v997 = vunpack.c.l.b16 %v747
      %v998 = vunpack.c.l.b16 %v750
      %v999 = vunpack.c.l.b16 %v754
      %v1000 = vunpack.c.l.b16 %v757
      %v1001 = vunpack.c.l.b16 %v761
      %v1002 = vunpack.c.l.b16 %v764
      %v1003 = vunpack.c.l.b16 %v768
      %v1004 = vunpack.c.l.b16 %v771
      %v1005 = vunpack.c.l.b16 %v775
      %v1006 = vunpack.c.l.b16 %v778
      %v1007 = vpack.c.b16 %v976, %v975
      %v1008 = vpack.c.b16 %v978, %v977
      %v1009 = vpack.c.b16 %v980, %v979
      %v1010 = vpack.c.b16 %v982, %v981
      %v1011 = vpack.c.b16 %v984, %v983
      %v1012 = vpack.c.b16 %v986, %v985
      %v1013 = vpack.c.b16 %v988, %v987
      %v1014 = vpack.c.b16 %v990, %v989
      %v1015 = vpack.c.b16 %v992, %v991
      %v1016 = vpack.c.b16 %v994, %v993
      %v1017 = vpack.c.b16 %v996, %v995
      %v1018 = vpack.c.b16 %v998, %v997
      %v1019 = vpack.c.b16 %v1000, %v999
      %v1020 = vpack.c.b16 %v1002, %v1001
      %v1021 = vpack.c.b16 %v1004, %v1003
      %v1022 = vpack.c.b16 %v1006, %v1005
      %1023 = vrot.lane.b32.xlu0 %v1007, 8
      %v1024 = vpop.permute.xlu0 %1023
      %1025 = vrot.lane.b32.xlu0 %v1008, 8
      %v1026 = vpop.permute.xlu0 %1025
      %1027 = vrot.lane.b32.xlu0 %v1009, 8
      %v1028 = vpop.permute.xlu0 %1027
      %1029 = vrot.lane.b32.xlu0 %v1010, 8
      %v1030 = vpop.permute.xlu0 %1029
      %1031 = vrot.lane.b32.xlu0 %v1011, 8
      %v1032 = vpop.permute.xlu0 %1031
      %1033 = vrot.lane.b32.xlu0 %v1012, 8
      %v1034 = vpop.permute.xlu0 %1033
      %1035 = vrot.lane.b32.xlu0 %v1013, 8
      %v1036 = vpop.permute.xlu0 %1035
      %1037 = vrot.lane.b32.xlu0 %v1014, 8
      %v1038 = vpop.permute.xlu0 %1037
      %1039 = vrot.lane.b32.xlu0 %v1015, 8
      %v1040 = vpop.permute.xlu0 %1039
      %1041 = vrot.lane.b32.xlu0 %v1016, 8
      %v1042 = vpop.permute.xlu0 %1041
      %1043 = vrot.lane.b32.xlu0 %v1017, 8
      %v1044 = vpop.permute.xlu0 %1043
      %1045 = vrot.lane.b32.xlu0 %v1018, 8
      %v1046 = vpop.permute.xlu0 %1045
      %1047 = vrot.lane.b32.xlu0 %v1019, 8
      %v1048 = vpop.permute.xlu0 %1047
      %1049 = vrot.lane.b32.xlu0 %v1020, 8
      %v1050 = vpop.permute.xlu0 %1049
      %1051 = vrot.lane.b32.xlu0 %v1021, 8
      %v1052 = vpop.permute.xlu0 %1051
      %1053 = vrot.lane.b32.xlu0 %v1022, 8
      %v1054 = vpop.permute.xlu0 %1053
      %v1055 = vunpack.c.l.b16 %v223
      %v1056 = vunpack.c.l.b16 %v224
      %v1057 = vpack.c.b16 %v1056, %v1055
      %1058 = vrot.lane.b32.xlu0 %v880, 12
      %v1059 = vpop.permute.xlu0 %1058
      %1060 = vrot.lane.b32.xlu0 %v881, 12
      %v1061 = vpop.permute.xlu0 %1060
      %1062 = vrot.lane.b32.xlu0 %v882, 12
      %v1063 = vpop.permute.xlu0 %1062
      %1064 = vrot.lane.b32.xlu0 %v883, 12
      %v1065 = vpop.permute.xlu0 %1064
      %1066 = vrot.lane.b32.xlu0 %v884, 12
      %v1067 = vpop.permute.xlu0 %1066
      %1068 = vrot.lane.b32.xlu0 %v885, 12
      %v1069 = vpop.permute.xlu0 %1068
      %1070 = vrot.lane.b32.xlu0 %v886, 12
      %v1071 = vpop.permute.xlu0 %1070
      %1072 = vrot.lane.b32.xlu0 %v887, 12
      %v1073 = vpop.permute.xlu0 %1072
      %1074 = vrot.lane.b32.xlu0 %v888, 12
      %v1075 = vpop.permute.xlu0 %1074
      %1076 = vrot.lane.b32.xlu0 %v889, 12
      %v1077 = vpop.permute.xlu0 %1076
      %1078 = vrot.lane.b32.xlu0 %v890, 12
      %v1079 = vpop.permute.xlu0 %1078
      %1080 = vrot.lane.b32.xlu0 %v891, 12
      %v1081 = vpop.permute.xlu0 %1080
      %1082 = vrot.lane.b32.xlu0 %v892, 12
      %v1083 = vpop.permute.xlu0 %1082
      %1084 = vrot.lane.b32.xlu0 %v893, 12
      %v1085 = vpop.permute.xlu0 %1084
      %1086 = vrot.lane.b32.xlu0 %v894, 12
      %v1087 = vpop.permute.xlu0 %1086
      %1088 = vrot.lane.b32.xlu0 %v1057, 12
      %v1089 = vpop.permute.xlu0 %1088
      %v1090 = vunpack.c.l.b16 %v792
      %v1091 = vunpack.c.l.b16 %v802
      %v1092 = vpack.c.b16 %v1091, %v1090
      %1093 = vrot.lane.b32.xlu0 %v928, 16
      %v1094 = vpop.permute.xlu0 %1093
      %1095 = vrot.lane.b32.xlu0 %v929, 16
      %v1096 = vpop.permute.xlu0 %1095
      %1097 = vrot.lane.b32.xlu0 %v930, 16
      %v1098 = vpop.permute.xlu0 %1097
      %1099 = vrot.lane.b32.xlu0 %v931, 16
      %v1100 = vpop.permute.xlu0 %1099
      %1101 = vrot.lane.b32.xlu0 %v932, 16
      %v1102 = vpop.permute.xlu0 %1101
      %1103 = vrot.lane.b32.xlu0 %v933, 16
      %v1104 = vpop.permute.xlu0 %1103
      %1105 = vrot.lane.b32.xlu0 %v934, 16
      %v1106 = vpop.permute.xlu0 %1105
      %1107 = vrot.lane.b32.xlu0 %v935, 16
      %v1108 = vpop.permute.xlu0 %1107
      %1109 = vrot.lane.b32.xlu0 %v936, 16
      %v1110 = vpop.permute.xlu0 %1109
      %1111 = vrot.lane.b32.xlu0 %v937, 16
      %v1112 = vpop.permute.xlu0 %1111
      %1113 = vrot.lane.b32.xlu0 %v938, 16
      %v1114 = vpop.permute.xlu0 %1113
      %1115 = vrot.lane.b32.xlu0 %v939, 16
      %v1116 = vpop.permute.xlu0 %1115
      %1117 = vrot.lane.b32.xlu0 %v940, 16
      %v1118 = vpop.permute.xlu0 %1117
      %1119 = vrot.lane.b32.xlu0 %v941, 16
      %v1120 = vpop.permute.xlu0 %1119
      %1121 = vrot.lane.b32.xlu0 %v942, 16
      %v1122 = vpop.permute.xlu0 %1121
      %1123 = vrot.lane.b32.xlu0 %v1092, 16
      %v1124 = vpop.permute.xlu0 %1123
      %v1125 = vunpack.c.l.b16 %v809
      %v1126 = vunpack.c.l.b16 %v812
      %v1127 = vpack.c.b16 %v1126, %v1125
      %1128 = vrot.lane.b32.xlu0 %v1008, 20
      %v1129 = vpop.permute.xlu0 %1128
      %1130 = vrot.lane.b32.xlu0 %v1009, 20
      %v1131 = vpop.permute.xlu0 %1130
      %1132 = vrot.lane.b32.xlu0 %v1010, 20
      %v1133 = vpop.permute.xlu0 %1132
      %1134 = vrot.lane.b32.xlu0 %v1011, 20
      %v1135 = vpop.permute.xlu0 %1134
      %1136 = vrot.lane.b32.xlu0 %v1012, 20
      %v1137 = vpop.permute.xlu0 %1136
      %1138 = vrot.lane.b32.xlu0 %v1013, 20
      %v1139 = vpop.permute.xlu0 %1138
      %1140 = vrot.lane.b32.xlu0 %v1014, 20
      %v1141 = vpop.permute.xlu0 %1140
      %1142 = vrot.lane.b32.xlu0 %v1015, 20
      %v1143 = vpop.permute.xlu0 %1142
      %1144 = vrot.lane.b32.xlu0 %v1016, 20
      %v1145 = vpop.permute.xlu0 %1144
      %1146 = vrot.lane.b32.xlu0 %v1017, 20
      %v1147 = vpop.permute.xlu0 %1146
      %1148 = vrot.lane.b32.xlu0 %v1018, 20
      %v1149 = vpop.permute.xlu0 %1148
      %1150 = vrot.lane.b32.xlu0 %v1019, 20
      %v1151 = vpop.permute.xlu0 %1150
      %1152 = vrot.lane.b32.xlu0 %v1020, 20
      %v1153 = vpop.permute.xlu0 %1152
      %1154 = vrot.lane.b32.xlu0 %v1021, 20
      %v1155 = vpop.permute.xlu0 %1154
      %1156 = vrot.lane.b32.xlu0 %v1022, 20
      %v1157 = vpop.permute.xlu0 %1156
      %1158 = vrot.lane.b32.xlu0 %v1127, 20
      %v1159 = vpop.permute.xlu0 %1158
      %v1160 = vunpack.c.l.b16 %v226
      %v1161 = vunpack.c.l.b16 %v227
      %v1162 = vpack.c.b16 %v1161, %v1160
      %1163 = vrot.lane.b32.xlu0 %v881, 24
      %v1164 = vpop.permute.xlu0 %1163
      %1165 = vrot.lane.b32.xlu0 %v882, 24
      %v1166 = vpop.permute.xlu0 %1165
      %1167 = vrot.lane.b32.xlu0 %v883, 24
      %v1168 = vpop.permute.xlu0 %1167
      %1169 = vrot.lane.b32.xlu0 %v884, 24
      %v1170 = vpop.permute.xlu0 %1169
      %1171 = vrot.lane.b32.xlu0 %v885, 24
      %v1172 = vpop.permute.xlu0 %1171
      %1173 = vrot.lane.b32.xlu0 %v886, 24
      %v1174 = vpop.permute.xlu0 %1173
      %1175 = vrot.lane.b32.xlu0 %v887, 24
      %v1176 = vpop.permute.xlu0 %1175
      %1177 = vrot.lane.b32.xlu0 %v888, 24
      %v1178 = vpop.permute.xlu0 %1177
      %1179 = vrot.lane.b32.xlu0 %v889, 24
      %v1180 = vpop.permute.xlu0 %1179
      %1181 = vrot.lane.b32.xlu0 %v890, 24
      %v1182 = vpop.permute.xlu0 %1181
      %1183 = vrot.lane.b32.xlu0 %v891, 24
      %v1184 = vpop.permute.xlu0 %1183
      %1185 = vrot.lane.b32.xlu0 %v892, 24
      %v1186 = vpop.permute.xlu0 %1185
      %1187 = vrot.lane.b32.xlu0 %v893, 24
      %v1188 = vpop.permute.xlu0 %1187
      %1189 = vrot.lane.b32.xlu0 %v894, 24
      %v1190 = vpop.permute.xlu0 %1189
      %1191 = vrot.lane.b32.xlu0 %v1057, 24
      %v1192 = vpop.permute.xlu0 %1191
      %1193 = vrot.lane.b32.xlu0 %v1162, 24
      %v1194 = vpop.permute.xlu0 %1193
      %v1195 = vunpack.c.l.b16 %v826
      %v1196 = vunpack.c.l.b16 %v836
      %v1197 = vpack.c.b16 %v1196, %v1195
      %1198 = vrot.lane.b32.xlu0 %v929, 28
      %v1199 = vpop.permute.xlu0 %1198
      %1200 = vrot.lane.b32.xlu0 %v930, 28
      %v1201 = vpop.permute.xlu0 %1200
      %1202 = vrot.lane.b32.xlu0 %v931, 28
      %v1203 = vpop.permute.xlu0 %1202
      %1204 = vrot.lane.b32.xlu0 %v932, 28
      %v1205 = vpop.permute.xlu0 %1204
      %1206 = vrot.lane.b32.xlu0 %v933, 28
      %v1207 = vpop.permute.xlu0 %1206
      %1208 = vrot.lane.b32.xlu0 %v934, 28
      %v1209 = vpop.permute.xlu0 %1208
      %1210 = vrot.lane.b32.xlu0 %v935, 28
      %v1211 = vpop.permute.xlu0 %1210
      %1212 = vrot.lane.b32.xlu0 %v936, 28
      %v1213 = vpop.permute.xlu0 %1212
      %1214 = vrot.lane.b32.xlu0 %v937, 28
      %v1215 = vpop.permute.xlu0 %1214
      %1216 = vrot.lane.b32.xlu0 %v938, 28
      %v1217 = vpop.permute.xlu0 %1216
      %1218 = vrot.lane.b32.xlu0 %v939, 28
      %v1219 = vpop.permute.xlu0 %1218
      %1220 = vrot.lane.b32.xlu0 %v940, 28
      %v1221 = vpop.permute.xlu0 %1220
      %1222 = vrot.lane.b32.xlu0 %v941, 28
      %v1223 = vpop.permute.xlu0 %1222
      %1224 = vrot.lane.b32.xlu0 %v942, 28
      %v1225 = vpop.permute.xlu0 %1224
      %1226 = vrot.lane.b32.xlu0 %v1092, 28
      %v1227 = vpop.permute.xlu0 %1226
      %1228 = vrot.lane.b32.xlu0 %v1197, 28
      %v1229 = vpop.permute.xlu0 %1228
      %v1230 = vunpack.c.l.b16 %v843
      %v1231 = vunpack.c.l.b16 %v846
      %v1232 = vpack.c.b16 %v1231, %v1230
      %1233 = vrot.lane.b32.xlu0 %v1009, 32
      %v1234 = vpop.permute.xlu0 %1233
      %1235 = vrot.lane.b32.xlu0 %v1010, 32
      %v1236 = vpop.permute.xlu0 %1235
      %1237 = vrot.lane.b32.xlu0 %v1011, 32
      %v1238 = vpop.permute.xlu0 %1237
      %1239 = vrot.lane.b32.xlu0 %v1012, 32
      %v1240 = vpop.permute.xlu0 %1239
      %1241 = vrot.lane.b32.xlu0 %v1013, 32
      %v1242 = vpop.permute.xlu0 %1241
      %1243 = vrot.lane.b32.xlu0 %v1014, 32
      %v1244 = vpop.permute.xlu0 %1243
      %1245 = vrot.lane.b32.xlu0 %v1015, 32
      %v1246 = vpop.permute.xlu0 %1245
      %1247 = vrot.lane.b32.xlu0 %v1016, 32
      %v1248 = vpop.permute.xlu0 %1247
      %1249 = vrot.lane.b32.xlu0 %v1017, 32
      %v1250 = vpop.permute.xlu0 %1249
      %1251 = vrot.lane.b32.xlu0 %v1018, 32
      %v1252 = vpop.permute.xlu0 %1251
      %1253 = vrot.lane.b32.xlu0 %v1019, 32
      %v1254 = vpop.permute.xlu0 %1253
      %1255 = vrot.lane.b32.xlu0 %v1020, 32
      %v1256 = vpop.permute.xlu0 %1255
      %1257 = vrot.lane.b32.xlu0 %v1021, 32
      %v1258 = vpop.permute.xlu0 %1257
      %1259 = vrot.lane.b32.xlu0 %v1022, 32
      %v1260 = vpop.permute.xlu0 %1259
      %1261 = vrot.lane.b32.xlu0 %v1127, 32
      %v1262 = vpop.permute.xlu0 %1261
      %1263 = vrot.lane.b32.xlu0 %v1232, 32
      %v1264 = vpop.permute.xlu0 %1263
      %vm1265 = vcmask 31744
      %v1268 = vsel %vm1265, %v879, %v944
      %v1271 = vsel %vm1265, %v880, %v946
      %v1274 = vsel %vm1265, %v881, %v948
      %v1277 = vsel %vm1265, %v882, %v950
      %v1280 = vsel %vm1265, %v883, %v952
      %v1283 = vsel %vm1265, %v884, %v954
      %v1286 = vsel %vm1265, %v885, %v956
      %v1289 = vsel %vm1265, %v886, %v958
      %v1292 = vsel %vm1265, %v887, %v960
      %v1295 = vsel %vm1265, %v888, %v962
      %v1298 = vsel %vm1265, %v889, %v964
      %v1301 = vsel %vm1265, %v890, %v966
      %v1304 = vsel %vm1265, %v891, %v968
      %v1307 = vsel %vm1265, %v892, %v970
      %v1310 = vsel %vm1265, %v893, %v972
      %v1313 = vsel %vm1265, %v894, %v974
      %vm1314 = vcmask 64512
      %v1316 = vsel %vm1314, %v1268, %v1024
      %v1318 = vsel %vm1314, %v1271, %v1026
      %v1320 = vsel %vm1314, %v1274, %v1028
      %v1322 = vsel %vm1314, %v1277, %v1030
      %v1324 = vsel %vm1314, %v1280, %v1032
      %v1326 = vsel %vm1314, %v1283, %v1034
      %v1328 = vsel %vm1314, %v1286, %v1036
      %v1330 = vsel %vm1314, %v1289, %v1038
      %v1332 = vsel %vm1314, %v1292, %v1040
      %v1334 = vsel %vm1314, %v1295, %v1042
      %v1336 = vsel %vm1314, %v1298, %v1044
      %v1338 = vsel %vm1314, %v1301, %v1046
      %v1340 = vsel %vm1314, %v1304, %v1048
      %v1342 = vsel %vm1314, %v1307, %v1050
      %v1344 = vsel %vm1314, %v1310, %v1052
      %v1346 = vsel %vm1314, %v1313, %v1054
      %vm1347 = vcmask 97280
      %v1349 = vsel %vm1347, %v1316, %v1059
      %v1351 = vsel %vm1347, %v1318, %v1061
      %v1353 = vsel %vm1347, %v1320, %v1063
      %v1355 = vsel %vm1347, %v1322, %v1065
      %v1357 = vsel %vm1347, %v1324, %v1067
      %v1359 = vsel %vm1347, %v1326, %v1069
      %v1361 = vsel %vm1347, %v1328, %v1071
      %v1363 = vsel %vm1347, %v1330, %v1073
      %v1365 = vsel %vm1347, %v1332, %v1075
      %v1367 = vsel %vm1347, %v1334, %v1077
      %v1369 = vsel %vm1347, %v1336, %v1079
      %v1371 = vsel %vm1347, %v1338, %v1081
      %v1373 = vsel %vm1347, %v1340, %v1083
      %v1375 = vsel %vm1347, %v1342, %v1085
      %v1377 = vsel %vm1347, %v1344, %v1087
      %v1379 = vsel %vm1347, %v1346, %v1089
      %vm1380 = vcmask 130048
      %v1382 = vsel %vm1380, %v1349, %v1094
      %v1384 = vsel %vm1380, %v1351, %v1096
      %v1386 = vsel %vm1380, %v1353, %v1098
      %v1388 = vsel %vm1380, %v1355, %v1100
      %v1390 = vsel %vm1380, %v1357, %v1102
      %v1392 = vsel %vm1380, %v1359, %v1104
      %v1394 = vsel %vm1380, %v1361, %v1106
      %v1396 = vsel %vm1380, %v1363, %v1108
      %v1398 = vsel %vm1380, %v1365, %v1110
      %v1400 = vsel %vm1380, %v1367, %v1112
      %v1402 = vsel %vm1380, %v1369, %v1114
      %v1404 = vsel %vm1380, %v1371, %v1116
      %v1406 = vsel %vm1380, %v1373, %v1118
      %v1408 = vsel %vm1380, %v1375, %v1120
      %v1410 = vsel %vm1380, %v1377, %v1122
      %v1412 = vsel %vm1380, %v1379, %v1124
      %vm1413 = vcmask 162816
      %v1415 = vsel %vm1413, %v1382, %v1129
      %v1417 = vsel %vm1413, %v1384, %v1131
      %v1419 = vsel %vm1413, %v1386, %v1133
      %v1421 = vsel %vm1413, %v1388, %v1135
      %v1423 = vsel %vm1413, %v1390, %v1137
      %v1425 = vsel %vm1413, %v1392, %v1139
      %v1427 = vsel %vm1413, %v1394, %v1141
      %v1429 = vsel %vm1413, %v1396, %v1143
      %v1431 = vsel %vm1413, %v1398, %v1145
      %v1433 = vsel %vm1413, %v1400, %v1147
      %v1435 = vsel %vm1413, %v1402, %v1149
      %v1437 = vsel %vm1413, %v1404, %v1151
      %v1439 = vsel %vm1413, %v1406, %v1153
      %v1441 = vsel %vm1413, %v1408, %v1155
      %v1443 = vsel %vm1413, %v1410, %v1157
      %v1445 = vsel %vm1413, %v1412, %v1159
      %vm1446 = vcmask 195584
      %v1448 = vsel %vm1446, %v1415, %v1164
      %v1450 = vsel %vm1446, %v1417, %v1166
      %v1452 = vsel %vm1446, %v1419, %v1168
      %v1454 = vsel %vm1446, %v1421, %v1170
      %v1456 = vsel %vm1446, %v1423, %v1172
      %v1458 = vsel %vm1446, %v1425, %v1174
      %v1460 = vsel %vm1446, %v1427, %v1176
      %v1462 = vsel %vm1446, %v1429, %v1178
      %v1464 = vsel %vm1446, %v1431, %v1180
      %v1466 = vsel %vm1446, %v1433, %v1182
      %v1468 = vsel %vm1446, %v1435, %v1184
      %v1470 = vsel %vm1446, %v1437, %v1186
      %v1472 = vsel %vm1446, %v1439, %v1188
      %v1474 = vsel %vm1446, %v1441, %v1190
      %v1476 = vsel %vm1446, %v1443, %v1192
      %v1478 = vsel %vm1446, %v1445, %v1194
      %vm1479 = vcmask 228352
      %v1481 = vsel %vm1479, %v1448, %v1199
      %v1483 = vsel %vm1479, %v1450, %v1201
      %v1485 = vsel %vm1479, %v1452, %v1203
      %v1487 = vsel %vm1479, %v1454, %v1205
      %v1489 = vsel %vm1479, %v1456, %v1207
      %v1491 = vsel %vm1479, %v1458, %v1209
      %v1493 = vsel %vm1479, %v1460, %v1211
      %v1495 = vsel %vm1479, %v1462, %v1213
      %v1497 = vsel %vm1479, %v1464, %v1215
      %v1499 = vsel %vm1479, %v1466, %v1217
      %v1501 = vsel %vm1479, %v1468, %v1219
      %v1503 = vsel %vm1479, %v1470, %v1221
      %v1505 = vsel %vm1479, %v1472, %v1223
      %v1507 = vsel %vm1479, %v1474, %v1225
      %v1509 = vsel %vm1479, %v1476, %v1227
      %v1511 = vsel %vm1479, %v1478, %v1229
      %vm1512 = vcmask 261120
      %v1514 = vsel %vm1512, %v1481, %v1234
      %v1516 = vsel %vm1512, %v1483, %v1236
      %v1518 = vsel %vm1512, %v1485, %v1238
      %v1520 = vsel %vm1512, %v1487, %v1240
      %v1522 = vsel %vm1512, %v1489, %v1242
      %v1524 = vsel %vm1512, %v1491, %v1244
      %v1526 = vsel %vm1512, %v1493, %v1246
      %v1528 = vsel %vm1512, %v1495, %v1248
      %v1530 = vsel %vm1512, %v1497, %v1250
      %v1532 = vsel %vm1512, %v1499, %v1252
      %v1534 = vsel %vm1512, %v1501, %v1254
      %v1536 = vsel %vm1512, %v1503, %v1256
      %v1538 = vsel %vm1512, %v1505, %v1258
      %v1540 = vsel %vm1512, %v1507, %v1260
      %v1542 = vsel %vm1512, %v1509, %v1262
      %v1544 = vsel %vm1512, %v1511, %v1264
      %v1545 = vld [vmem:[%s1] sm:$0xf]
      %v1546 = vld [vmem:[%s1 + $0x4] sm:$0xf]
      %v1547 = vld [vmem:[%s1 + $0x8] sm:$0xf]
      %v1548 = vld [vmem:[%s1 + $0xc] sm:$0xf]
      %v1549 = vld [vmem:[%s1 + $0x10] sm:$0x3]
      %v1555 = vunpack.c.l.b16 %v1545
      %v1556 = vunpack.c.l.b16 %v1546
      %v1557 = vunpack.c.l.b16 %v1547
      %v1558 = vunpack.c.l.b16 %v1548
      %v1559 = vunpack.c.l.b16 %v1549
      %v1560 = vpack.c.b16 %v1556, %v1555
      %v1561 = vpack.c.b16 %v1558, %v1557
      %v1562 = vpack.c.b16 %v1559, %v1559
      %vm1565 = vcmask 293888
      %v1566 = vsel %vm1565, %v1514, 0
      %v1568 = vsel %vm1565, %v1516, 0
      %v1570 = vsel %vm1565, %v1518, 0
      %v1572 = vsel %vm1565, %v1520, 0
      %v1574 = vsel %vm1565, %v1522, 0
      %v1576 = vsel %vm1565, %v1524, 0
      %v1578 = vsel %vm1565, %v1526, 0
      %v1580 = vsel %vm1565, %v1528, 0
      %v1582 = vsel %vm1565, %v1530, 0
      %v1584 = vsel %vm1565, %v1532, 0
      %v1586 = vsel %vm1565, %v1534, 0
      %v1588 = vsel %vm1565, %v1536, 0
      %v1590 = vsel %vm1565, %v1538, 0
      %v1592 = vsel %vm1565, %v1540, 0
      %v1594 = vsel %vm1565, %v1542, 0
      %v1596 = vsel %vm1565, %v1544, 0
      %vm1598 = vcmask 1041408
      %v1600 = vsel %vm1598, %v1562, 0
      %1602 = vmatpush.bf16.msra.mxu0 0
      %1603 = vmatpush.bf16.msra.mxu0 0
      %1604 = vmatpush.bf16.msra.mxu0 0
      %1605 = vmatpush.bf16.msra.mxu0 0
      %1606 = vmatpush.bf16.msra.mxu0 0
      %1607 = vmatpush.bf16.msra.mxu0 %v1600
      %1608 = vmatpush.bf16.msra.mxu0 %v1561
      %1609 = vmatpush.bf16.msra.mxu0 %v1560
      %1610 = vmatmul.bf16.gmra.mxu0 %v1566
      %v1611 = vpop.f32.mrf.mxu0
      %v1612 = vadd.f32 0.0, %v1611
      %v1613 = vpop.f32.mrf.mxu0
      %v1614 = vadd.f32 0.0, %v1613
      %1615 = vmatmul.bf16.gmra.mxu0 %v1568
      %v1616 = vpop.f32.mrf.mxu0
      %v1617 = vadd.f32 0.0, %v1616
      %v1618 = vpop.f32.mrf.mxu0
      %v1619 = vadd.f32 0.0, %v1618
      %1620 = vmatmul.bf16.gmra.mxu0 %v1570
      %v1621 = vpop.f32.mrf.mxu0
      %v1622 = vadd.f32 0.0, %v1621
      %v1623 = vpop.f32.mrf.mxu0
      %v1624 = vadd.f32 0.0, %v1623
      %1625 = vmatmul.bf16.gmra.mxu0 %v1572
      %v1626 = vpop.f32.mrf.mxu0
      %v1627 = vadd.f32 0.0, %v1626
      %v1628 = vpop.f32.mrf.mxu0
      %v1629 = vadd.f32 0.0, %v1628
      %1630 = vmatmul.bf16.gmra.mxu0 %v1574
      %v1631 = vpop.f32.mrf.mxu0
      %v1632 = vadd.f32 0.0, %v1631
      %v1633 = vpop.f32.mrf.mxu0
      %v1634 = vadd.f32 0.0, %v1633
      %1635 = vmatmul.bf16.gmra.mxu0 %v1576
      %v1636 = vpop.f32.mrf.mxu0
      %v1637 = vadd.f32 0.0, %v1636
      %v1638 = vpop.f32.mrf.mxu0
      %v1639 = vadd.f32 0.0, %v1638
      %1640 = vmatmul.bf16.gmra.mxu0 %v1578
      %v1641 = vpop.f32.mrf.mxu0
      %v1642 = vadd.f32 0.0, %v1641
      %v1643 = vpop.f32.mrf.mxu0
      %v1644 = vadd.f32 0.0, %v1643
      %1645 = vmatmul.bf16.gmra.mxu0 %v1580
      %v1646 = vpop.f32.mrf.mxu0
      %v1647 = vadd.f32 0.0, %v1646
      %v1648 = vpop.f32.mrf.mxu0
      %v1649 = vadd.f32 0.0, %v1648
      %1650 = vmatmul.bf16.gmra.mxu0 %v1582
      %v1651 = vpop.f32.mrf.mxu0
      %v1652 = vadd.f32 0.0, %v1651
      %v1653 = vpop.f32.mrf.mxu0
      %v1654 = vadd.f32 0.0, %v1653
      %1655 = vmatmul.bf16.gmra.mxu0 %v1584
      %v1656 = vpop.f32.mrf.mxu0
      %v1657 = vadd.f32 0.0, %v1656
      %v1658 = vpop.f32.mrf.mxu0
      %v1659 = vadd.f32 0.0, %v1658
      %1660 = vmatmul.bf16.gmra.mxu0 %v1586
      %v1661 = vpop.f32.mrf.mxu0
      %v1662 = vadd.f32 0.0, %v1661
      %v1663 = vpop.f32.mrf.mxu0
      %v1664 = vadd.f32 0.0, %v1663
      %1665 = vmatmul.bf16.gmra.mxu0 %v1588
      %v1666 = vpop.f32.mrf.mxu0
      %v1667 = vadd.f32 0.0, %v1666
      %v1668 = vpop.f32.mrf.mxu0
      %v1669 = vadd.f32 0.0, %v1668
      %1670 = vmatmul.bf16.gmra.mxu0 %v1590
      %v1671 = vpop.f32.mrf.mxu0
      %v1672 = vadd.f32 0.0, %v1671
      %v1673 = vpop.f32.mrf.mxu0
      %v1674 = vadd.f32 0.0, %v1673
      %1675 = vmatmul.bf16.gmra.mxu0 %v1592
      %v1676 = vpop.f32.mrf.mxu0
      %v1677 = vadd.f32 0.0, %v1676
      %v1678 = vpop.f32.mrf.mxu0
      %v1679 = vadd.f32 0.0, %v1678
      %1680 = vmatmul.bf16.gmra.mxu0 %v1594
      %v1681 = vpop.f32.mrf.mxu0
      %v1682 = vadd.f32 0.0, %v1681
      %v1683 = vpop.f32.mrf.mxu0
      %v1684 = vadd.f32 0.0, %v1683
      %1685 = vmatmul.bf16.gmra.mxu0 %v1596
      %v1686 = vpop.f32.mrf.mxu0
      %v1687 = vadd.f32 0.0, %v1686
      %v1688 = vpop.f32.mrf.mxu0
      %v1689 = vadd.f32 0.0, %v1688
      %1690 = vdwg.mxu0
      %1691 = vst [vmem:[%s168] sm:$0xff] %v1612
      %1692 = vst [vmem:[%s168 + $0x8] sm:$0xff] %v1614
      %1693 = vst [vmem:[%s168 + $0x10] sm:$0xff] %v1617
      %1694 = vst [vmem:[%s168 + $0x18] sm:$0xff] %v1619
      %1695 = vst [vmem:[%s168 + $0x20] sm:$0xff] %v1622
      %1696 = vst [vmem:[%s168 + $0x28] sm:$0xff] %v1624
      %1697 = vst [vmem:[%s168 + $0x30] sm:$0xff] %v1627
      %1698 = vst [vmem:[%s168 + $0x38] sm:$0xff] %v1629
      %1699 = vst [vmem:[%s168 + $0x40] sm:$0xff] %v1632
      %1700 = vst [vmem:[%s168 + $0x48] sm:$0xff] %v1634
      %1701 = vst [vmem:[%s168 + $0x50] sm:$0xff] %v1637
      %1702 = vst [vmem:[%s168 + $0x58] sm:$0xff] %v1639
      %1703 = vst [vmem:[%s168 + $0x60] sm:$0xff] %v1642
      %1704 = vst [vmem:[%s168 + $0x68] sm:$0xff] %v1644
      %1705 = vst [vmem:[%s168 + $0x70] sm:$0xff] %v1647
      %1706 = vst [vmem:[%s168 + $0x78] sm:$0xff] %v1649
      %1707 = vst [vmem:[%s168 + $0x80] sm:$0xff] %v1652
      %1708 = vst [vmem:[%s168 + $0x88] sm:$0xff] %v1654
      %1709 = vst [vmem:[%s168 + $0x90] sm:$0xff] %v1657
      %1710 = vst [vmem:[%s168 + $0x98] sm:$0xff] %v1659
      %1711 = vst [vmem:[%s168 + $0xa0] sm:$0xff] %v1662
      %1712 = vst [vmem:[%s168 + $0xa8] sm:$0xff] %v1664
      %1713 = vst [vmem:[%s168 + $0xb0] sm:$0xff] %v1667
      %1714 = vst [vmem:[%s168 + $0xb8] sm:$0xff] %v1669
      %1715 = vst [vmem:[%s168 + $0xc0] sm:$0xff] %v1672
      %1716 = vst [vmem:[%s168 + $0xc8] sm:$0xff] %v1674
      %1717 = vst [vmem:[%s168 + $0xd0] sm:$0xff] %v1677
      %1718 = vst [vmem:[%s168 + $0xd8] sm:$0xff] %v1679
      %1719 = vst [vmem:[%s168 + $0xe0] sm:$0xff] %v1682
      %1720 = vst [vmem:[%s168 + $0xe8] sm:$0xff] %v1684
      %1721 = vst [vmem:[%s168 + $0xf0] sm:$0xff] %v1687
      %1722 = vst [vmem:[%s168 + $0xf8] sm:$0xff] %v1689
      %v1723 = vadd.f32 %v1612, %v1614
      %v1724 = vadd.f32 %v1723, %v1617
      %v1725 = vadd.f32 %v1724, %v1619
      %v1726 = vadd.f32 %v1725, %v1622
      %v1727 = vadd.f32 %v1726, %v1624
      %v1728 = vadd.f32 %v1727, %v1627
      %v1729 = vadd.f32 %v1728, %v1629
      %v1730 = vadd.f32 %v1729, %v1632
      %v1731 = vadd.f32 %v1730, %v1634
      %v1732 = vadd.f32 %v1731, %v1637
      %v1733 = vadd.f32 %v1732, %v1639
      %v1734 = vadd.f32 %v1733, %v1642
      %v1735 = vadd.f32 %v1734, %v1644
      %v1736 = vadd.f32 %v1735, %v1647
      %v1737 = vadd.f32 %v1736, %v1649
      %v1738 = vadd.f32 %v1737, %v1652
      %v1739 = vadd.f32 %v1738, %v1654
      %v1740 = vadd.f32 %v1739, %v1657
      %v1741 = vadd.f32 %v1740, %v1659
      %v1742 = vadd.f32 %v1741, %v1662
      %v1743 = vadd.f32 %v1742, %v1664
      %v1744 = vadd.f32 %v1743, %v1667
      %v1745 = vadd.f32 %v1744, %v1669
      %v1746 = vadd.f32 %v1745, %v1672
      %v1747 = vadd.f32 %v1746, %v1674
      %v1748 = vadd.f32 %v1747, %v1677
      %v1749 = vadd.f32 %v1748, %v1679
      %v1750 = vadd.f32 %v1749, %v1682
      %v1751 = vadd.f32 %v1750, %v1684
      %v1752 = vadd.f32 %v1751, %v1687
      %v1753 = vadd.f32 %v1752, %v1689
      %v1754 = vrot.slane %v1753, 4
      %v1755 = vadd.f32 %v1753, %v1754
      %v1756 = vrot.slane %v1755, 2
      %v1757 = vadd.f32 %v1755, %v1756
      %v1758 = vrot.slane %v1757, 1
      %v1759 = vadd.f32 %v1757, %v1758
      %v1760 = vmul.f32 %v1612, %v1612
      %v1761 = vmul.f32 %v1614, %v1614
      %v1762 = vmul.f32 %v1617, %v1617
      %v1763 = vmul.f32 %v1619, %v1619
      %v1764 = vmul.f32 %v1622, %v1622
      %v1765 = vmul.f32 %v1624, %v1624
      %v1766 = vmul.f32 %v1627, %v1627
      %v1767 = vmul.f32 %v1629, %v1629
      %v1768 = vmul.f32 %v1632, %v1632
      %v1769 = vmul.f32 %v1634, %v1634
      %v1770 = vmul.f32 %v1637, %v1637
      %v1771 = vmul.f32 %v1639, %v1639
      %v1772 = vmul.f32 %v1642, %v1642
      %v1773 = vmul.f32 %v1644, %v1644
      %v1774 = vmul.f32 %v1647, %v1647
      %v1775 = vmul.f32 %v1649, %v1649
      %v1776 = vmul.f32 %v1652, %v1652
      %v1777 = vmul.f32 %v1654, %v1654
      %v1778 = vmul.f32 %v1657, %v1657
      %v1779 = vmul.f32 %v1659, %v1659
      %v1780 = vmul.f32 %v1662, %v1662
      %v1781 = vmul.f32 %v1664, %v1664
      %v1782 = vmul.f32 %v1667, %v1667
      %v1783 = vmul.f32 %v1669, %v1669
      %v1784 = vmul.f32 %v1672, %v1672
      %v1785 = vmul.f32 %v1674, %v1674
      %v1786 = vmul.f32 %v1677, %v1677
      %v1787 = vmul.f32 %v1679, %v1679
      %v1788 = vmul.f32 %v1682, %v1682
      %v1789 = vmul.f32 %v1684, %v1684
      %v1790 = vmul.f32 %v1687, %v1687
      %v1791 = vmul.f32 %v1689, %v1689
      %v1792 = vadd.f32 %v1760, %v1761
      %v1793 = vadd.f32 %v1792, %v1762
      %v1794 = vadd.f32 %v1793, %v1763
      %v1795 = vadd.f32 %v1794, %v1764
      %v1796 = vadd.f32 %v1795, %v1765
      %v1797 = vadd.f32 %v1796, %v1766
      %v1798 = vadd.f32 %v1797, %v1767
      %v1799 = vadd.f32 %v1798, %v1768
      %v1800 = vadd.f32 %v1799, %v1769
      %v1801 = vadd.f32 %v1800, %v1770
      %v1802 = vadd.f32 %v1801, %v1771
      %v1803 = vadd.f32 %v1802, %v1772
      %v1804 = vadd.f32 %v1803, %v1773
      %v1805 = vadd.f32 %v1804, %v1774
      %v1806 = vadd.f32 %v1805, %v1775
      %v1807 = vadd.f32 %v1806, %v1776
      %v1808 = vadd.f32 %v1807, %v1777
      %v1809 = vadd.f32 %v1808, %v1778
      %v1810 = vadd.f32 %v1809, %v1779
      %v1811 = vadd.f32 %v1810, %v1780
      %v1812 = vadd.f32 %v1811, %v1781
      %v1813 = vadd.f32 %v1812, %v1782
      %v1814 = vadd.f32 %v1813, %v1783
      %v1815 = vadd.f32 %v1814, %v1784
      %v1816 = vadd.f32 %v1815, %v1785
      %v1817 = vadd.f32 %v1816, %v1786
      %v1818 = vadd.f32 %v1817, %v1787
      %v1819 = vadd.f32 %v1818, %v1788
      %v1820 = vadd.f32 %v1819, %v1789
      %v1821 = vadd.f32 %v1820, %v1790
      %v1822 = vadd.f32 %v1821, %v1791
      %v1823 = vrot.slane %v1822, 4
      %v1824 = vadd.f32 %v1822, %v1823
      %v1825 = vrot.slane %v1824, 2
      %v1826 = vadd.f32 %v1824, %v1825
      %v1827 = vrot.slane %v1826, 1
      %v1828 = vadd.f32 %v1826, %v1827
      %v1829 = vld [vmem:[%s3] sm:$0x3]
      %vm1830 = vcmask 1040384
      %v1831 = vsel %vm1830, %v1759, %v1828
      %v1832 = vadd.f32 %v1829, %v1831
      %1833 = vst [vmem:[%s3] sm:$0x3] %v1832
      %p1834 = scmp.lt.s32.totalorder %s15, 1
      %s1835 = scalar_select %p1834, %s15, 1
      %s1836 = smul.addr %s1835, 32
      %s1837 = smul.addr %s1836, 8
      %s1838 = scalar_lea.vmem %s2, %s1837
      // Predicated region
      $region33: #{scale_forward.2} parent=27 // pred_check
        %p1839 = pneg %p80
      $region34: #{scale_forward.2} parent=27 // pred_check_branch
        %1841 = sbr.rel (%p1839) target = $region36
      $region35: #{scale_forward.2} parent=27 // pred_region
        _
      $region36: #{scale_forward.2} parent=27 // pred_fallthru
        _
      // Predicated region
      $region37: #{scale_forward.2} parent=27 // pred_check
        %p1842 = pneg %p101
      $region38: #{scale_forward.2} parent=27 // pred_check_branch
        %1844 = sbr.rel (%p1842) target = $region40
      $region39: #{scale_forward.2} parent=27 // pred_region
        _
      $region40: #{scale_forward.2} parent=27 // pred_fallthru
        _
      // Predicated region
      $region41: #{scale_forward.2} parent=27 // pred_check
        %p1845 = pneg %p101
      $region42: #{scale_forward.2} parent=27 // pred_check_branch
        %1847 = sbr.rel (%p1845) target = $region44
      $region43: #{scale_forward.2} parent=27 // pred_region
        _
      $region44: #{scale_forward.2} parent=27 // pred_fallthru
        _
    $region28: #{scale_forward.2} parent=5 // pred_fallthru
      _
    %p1848 = scmp.le.s32.totalorder 2, %s10
    // Predicated region
    $region45: #{scale_forward.2} parent=5 // pred_check
      %p1849 = pneg %p1848
    $region46: #{scale_forward.2} parent=5 // pred_check_branch
      %1851 = sbr.rel (%p1849) target = $region48
    $region47: #{scale_forward.2} parent=5 // pred_region
      %s1852 = ssub.s32 %s10, 2
      // Predicated region
      $region49: #{scale_forward.2} parent=47 // pred_check
        %p1853 = pneg %p86
      $region50: #{scale_forward.2} parent=47 // pred_check_branch
        %1855 = sbr.rel (%p1853) target = $region52
      $region51: #{scale_forward.2} parent=47 // pred_region
        %p1856 = scmp.lt.s32.totalorder %s16, 1
        %s1857 = scalar_select %p1856, %s16, 1
        %s1858 = smul.addr %s1857, 32
        %s1859 = smul.addr %s1858, 8
        %s1860 = scalar_lea.vmem %s2, %s1859
      $region52: #{scale_forward.2} parent=47 // pred_fallthru
        _
    $region48: #{scale_forward.2} parent=5 // pred_fallthru
      _
  $region6: #{scale_forward.2} parent=0 // loop_footer
    %s14 = sadd.s32 1, %s10
  $region7: #{scale_forward.2} parent=0 // loop_footer_branch
    %9 = sbr.rel target = $region3
  $region8: #{scale_forward.2} parent=0 // loop_exit
    _

</llo_original>
